<compile_context>
chip_gen: v7x
topology: tpu7x:2x2x1
jax: 0.10.0
libtpu: 0.0.40
codegen_flags: <defaults>
</compile_context>

<pallas_src>
import jax
import jax.numpy as jnp
from jax.experimental import pallas as pl
from jax.experimental.pallas import tpu as pltpu

# ---- synthetic "args" configuration (small, deterministic) ----
VOCAB = 50
EMB_DIM = 32          # embedding hidden_dim (== embedding_fc in/out)
SEQ_LEN = 16          # sequence length L (power of two -> % lowers to AND)
FILTERS = (3, 4, 5)   # args.filters
FILTER_NUM = 16       # args.filter_num
HIDDEN_DIM = 32       # args.hidden_dim
NUM_CLASS = 2         # args.num_class
BATCH = 16

MAX_K = max(FILTERS)
N_FILTERS = len(FILTERS)
CONCAT_DIM = N_FILTERS * FILTER_NUM          # 48

_pad128 = lambda n: ((n + 127) // 128) * 128
VOCAB_PAD = _pad128(VOCAB)                   # 128
EMB_PAD = _pad128(EMB_DIM)                   # 128
CONCAT_PAD = _pad128(CONCAT_DIM)             # 128
HID_PAD = _pad128(HIDDEN_DIM)                # 128
OUT_PAD = _pad128(HIDDEN_DIM + NUM_CLASS)    # 128


def encoder_kernel(idx_ref, table_ref, wconv_ref, bconv_ref,
                   wfc2_ref, bfc2_ref, wlast_ref, blast_ref, out_ref):
    """One batch tile. idx_ref is (Bt*L, 1) int32 token ids, everything else resident weights."""
    rows = idx_ref.shape[0]
    bt = rows // SEQ_LEN

    # --- fused embedding gather + embedding_fc (folded into the table) ---------------
    # gather as one-hot matmul: exact 0/1 one-hot, bf16 operands, f32 accumulate.
    idx = idx_ref[...]                                                   # (rows, 1) int32
    lane = jax.lax.broadcasted_iota(jnp.int32, (rows, VOCAB_PAD), 1)
    one_hot = (lane == idx).astype(jnp.float32)
    emb = jnp.dot(one_hot.astype(jnp.bfloat16), table_ref[...],
                  preferred_element_type=jnp.float32)                    # (rows, EMB_PAD)
    h = jnp.maximum(emb, 0.0)                # relu(fc1); dropout = identity (eval)

    # --- causal multi-width conv: per-tap shifted matmul, f32 accumulator ------------
    # Row r = b*L + t. Tap jj wants h[b, t - s] with s = MAX_K-1-jj, zero for t < s.
    # Sublane roll by s + mask (t mod L) < s gives exactly that (also kills cross-batch bleed).
    t_col = jax.lax.broadcasted_iota(jnp.int32, (rows, 1), 0) % SEQ_LEN
    acc = None
    for jj in range(MAX_K):
        s = MAX_K - 1 - jj
        if s == 0:
            win = h
        else:
            win = jnp.where(t_col < s, 0.0, pltpu.roll(h, shift=s, axis=0))
        d = jnp.dot(win.astype(jnp.bfloat16), wconv_ref[jj],
                    preferred_element_type=jnp.float32)                  # (rows, CONCAT_PAD)
        acc = d if acc is None else acc + d

    conv = jnp.maximum(acc + bconv_ref[...], 0.0).reshape(bt, SEQ_LEN, CONCAT_PAD)
    pooled = jnp.max(conv, axis=1)                                       # (bt, CONCAT_PAD)

    # --- fc2 + ReLU, then fused [I | w_out | 0] classifier: one lane-dense 128 store --
    hidden = jnp.maximum(
        jnp.dot(pooled.astype(jnp.bfloat16), wfc2_ref[...],
                preferred_element_type=jnp.float32) + bfc2_ref[...], 0.0)  # (bt, HID_PAD)
    out_ref[...] = jnp.dot(hidden.astype(jnp.bfloat16), wlast_ref[...],
                           preferred_element_type=jnp.float32) + blast_ref[...]


def encoder_forward(x_indx, kernel_params, *, batch_tile=None):
    B = x_indx.shape[0]
    idx = jnp.squeeze(x_indx, axis=1).reshape(B * SEQ_LEN, 1).astype(jnp.int32)

    if batch_tile is None:
        # Prefer >= 2 grid steps (pipeline overlap + v7x 2-TC sharding) with 8-aligned
        # output blocks; cap tile rows for VMEM headroom (v7x has 64 MiB physical).
        max_tile_rows = 4096
        batch_tile = B
        for cand in range(min(B // 2, max(max_tile_rows // SEQ_LEN, 8)), 7, -1):
            if B % cand == 0 and cand % 8 == 0:
                batch_tile = cand
                break
    assert B % batch_tile == 0
    assert batch_tile == B or batch_tile % 8 == 0, "output block must be 8-sublane aligned"
    nb = B // batch_tile

    def const_spec(shape):
        nd = len(shape)
        return pl.BlockSpec(shape, lambda i, nd=nd: (0,) * nd)

    kp = kernel_params
    in_specs = [
        pl.BlockSpec((batch_tile * SEQ_LEN, 1), lambda i: (i, 0)),   # token indices
        const_spec((VOCAB_PAD, EMB_PAD)),                            # folded embedding+fc1 table
        const_spec((MAX_K, EMB_PAD, CONCAT_PAD)),                    # conv taps (tap-major)
        const_spec((1, CONCAT_PAD)),                                 # conv bias
        const_spec((CONCAT_PAD, HID_PAD)),                           # fc2
        const_spec((1, HID_PAD)),                                    # fc2 bias
        const_spec((HID_PAD, OUT_PAD)),                              # [I | w_out | 0]
        const_spec((1, OUT_PAD)),                                    # [0 | b_out | 0]
    ]
    out_specs = pl.BlockSpec((batch_tile, OUT_PAD), lambda i: (i, 0))

    out = pl.pallas_call(
        encoder_kernel,
        grid=(nb,),
        in_specs=in_specs,
        out_specs=out_specs,
        out_shape=jax.ShapeDtypeStruct((B, OUT_PAD), jnp.float32),
        compiler_params=pltpu.CompilerParams(dimension_semantics=("parallel",)),
    )(idx, kp["table"], kp["w_conv"], kp["b_conv"],
      kp["w_fc2"], kp["b_fc2"], kp["w_last"], kp["b_last"])

    hidden = out[:, :HIDDEN_DIM]
    logit = out[:, HIDDEN_DIM:HIDDEN_DIM + NUM_CLASS]
    return logit, hidden


def reference_forward(x_indx, p):
    """Pure-JAX f32 reference mirroring the PyTorch forward (eval mode, mask=None)."""
    x = jnp.take(p["embedding"], jnp.squeeze(x_indx, axis=1), axis=0)        # (B, L, D)
    h = jax.nn.relu(jnp.einsum("bld,de->ble", x, p["w_fc"]) + p["b_fc"])
    hp = jnp.pad(h, ((0, 0), (MAX_K - 1, 0), (0, 0)))                        # causal left pad
    wc = jnp.transpose(p["w_conv"], (1, 2, 0, 3)).reshape(MAX_K, EMB_DIM, CONCAT_DIM)
    acc = jnp.zeros((x.shape[0], SEQ_LEN, CONCAT_DIM)) + p["b_conv"].reshape(1, 1, CONCAT_DIM)
    for jj in range(MAX_K):
        acc = acc + jnp.einsum("bld,dc->blc", hp[:, jj:jj + SEQ_LEN, :], wc[jj])
    pooled = jnp.max(jax.nn.relu(acc), axis=1)                               # (B, nf*F)
    hidden = jax.nn.relu(pooled @ p["w_fc2"] + p["b_fc2"])
    logit = hidden @ p["w_out"] + p["b_out"]
    return logit, hidden


def init_params(key):
    ks = jax.random.split(key, 9)
    scale = 0.1
    embedding = jax.random.normal(ks[0], (VOCAB, EMB_DIM), jnp.float32) * scale

    w_fc = jax.random.normal(ks[1], (EMB_DIM, EMB_DIM), jnp.float32) * scale
    b_fc = jax.random.normal(ks[2], (1, EMB_DIM), jnp.float32) * scale

    # Conv weights: per filter n of width k, MAX_K taps with the leading MAX_K - k taps zeroed
    # (this zeroing MUST be re-applied when importing trained checkpoints).
    w_conv = jax.random.normal(ks[3], (N_FILTERS, MAX_K, EMB_DIM, FILTER_NUM), jnp.float32) * scale
    tap_mask = jnp.array([[1.0 if jj >= MAX_K - k else 0.0 for jj in range(MAX_K)]
                          for k in FILTERS], jnp.float32)
    w_conv = w_conv * tap_mask[:, :, None, None]
    b_conv = jax.random.normal(ks[4], (N_FILTERS, FILTER_NUM), jnp.float32) * scale

    w_fc2 = jax.random.normal(ks[5], (CONCAT_DIM, HIDDEN_DIM), jnp.float32) * scale
    b_fc2 = jax.random.normal(ks[6], (1, HIDDEN_DIM), jnp.float32) * scale

    w_out = jax.random.normal(ks[7], (HIDDEN_DIM, NUM_CLASS), jnp.float32) * scale
    b_out = jax.random.normal(ks[8], (1, NUM_CLASS), jnp.float32) * scale

    return dict(embedding=embedding, w_fc=w_fc, b_fc=b_fc,
                w_conv=w_conv, b_conv=b_conv,
                w_fc2=w_fc2, b_fc2=b_fc2, w_out=w_out, b_out=b_out)


def pack_params(p):
    """Host-side packing: fold fc1 into the table, pad everything to 128 lanes, cast to bf16."""
    f32, bf16 = jnp.float32, jnp.bfloat16

    # embedding_fc folded into the table (eval-only; re-fold if weights change).
    table = p["embedding"] @ p["w_fc"] + p["b_fc"]                               # (VOCAB, EMB_DIM)
    table_pad = jnp.zeros((VOCAB_PAD, EMB_PAD), f32).at[:VOCAB, :EMB_DIM].set(table)

    # conv weights tap-major: (MAX_K, EMB_DIM, CONCAT_DIM), zero-padded to 128x128 per tap.
    wc = jnp.transpose(p["w_conv"], (1, 2, 0, 3)).reshape(MAX_K, EMB_DIM, CONCAT_DIM)
    wc_pad = jnp.zeros((MAX_K, EMB_PAD, CONCAT_PAD), f32).at[:, :EMB_DIM, :CONCAT_DIM].set(wc)
    bc_pad = jnp.zeros((1, CONCAT_PAD), f32).at[0, :CONCAT_DIM].set(p["b_conv"].reshape(-1))

    wfc2_pad = jnp.zeros((CONCAT_PAD, HID_PAD), f32).at[:CONCAT_DIM, :HIDDEN_DIM].set(p["w_fc2"])
    bfc2_pad = jnp.zeros((1, HID_PAD), f32).at[0, :HIDDEN_DIM].set(p["b_fc2"].reshape(-1))

    # classifier fused with identity pass-through: one matmul emits [hidden | logit | pad].
    w_last = jnp.zeros((HID_PAD, OUT_PAD), f32)
    w_last = w_last.at[:HIDDEN_DIM, :HIDDEN_DIM].set(jnp.eye(HIDDEN_DIM, dtype=f32))
    w_last = w_last.at[:HIDDEN_DIM, HIDDEN_DIM:HIDDEN_DIM + NUM_CLASS].set(p["w_out"])
    b_last = jnp.zeros((1, OUT_PAD), f32).at[0, HIDDEN_DIM:HIDDEN_DIM + NUM_CLASS].set(
        p["b_out"].reshape(-1))

    return dict(
        table=table_pad.astype(bf16),
        w_conv=wc_pad.astype(bf16), b_conv=bc_pad,
        w_fc2=wfc2_pad.astype(bf16), b_fc2=bfc2_pad,
        w_last=w_last.astype(bf16), b_last=b_last,
    )


if __name__ == "__main__":
    key = jax.random.PRNGKey(0)
    k_idx, k_par = jax.random.split(key)
    params = init_params(k_par)
    kernel_params = pack_params(params)

    # x_indx: batch of word indices, shape (B, 1, L) as in the PyTorch module
    x_indx = jax.random.randint(k_idx, (BATCH, 1, SEQ_LEN), 0, VOCAB, dtype=jnp.int32)

    logit, hidden = jax.block_until_ready(encoder_forward(x_indx, kernel_params))
    logit_ref, hidden_ref = reference_forward(x_indx, params)

    assert logit.shape == (BATCH, NUM_CLASS) and hidden.shape == (BATCH, HIDDEN_DIM)
    # bf16 matmul operands (f32 accumulation) -> ~1e-2 relative tolerance vs f32 reference
    assert jnp.allclose(logit, logit_ref, atol=2e-2, rtol=2e-2)
    assert jnp.allclose(hidden, hidden_ref, atol=2e-2, rtol=2e-2)
    print("KERNEL_OK")
</pallas_src>

<mosaic_0001>
module attributes {stable_mosaic.version = 11 : i64} {
  func.func @encoder_kernel(%arg0: i32, %arg1: memref<128x1xi32, #tpu.memory_space<vmem>>, %arg2: memref<128x128xbf16, #tpu.memory_space<vmem>>, %arg3: memref<5x128x128xbf16, #tpu.memory_space<vmem>>, %arg4: memref<1x128xf32, #tpu.memory_space<vmem>>, %arg5: memref<128x128xbf16, #tpu.memory_space<vmem>>, %arg6: memref<1x128xf32, #tpu.memory_space<vmem>>, %arg7: memref<128x128xbf16, #tpu.memory_space<vmem>>, %arg8: memref<1x128xf32, #tpu.memory_space<vmem>>, %arg9: memref<8x128xf32, #tpu.memory_space<vmem>>) attributes {dimension_semantics = [#tpu.dimension_semantics<parallel>], iteration_bounds = array<i64: 2>, scalar_prefetch = 0 : i64, scratch_operands = 0 : i64, tpu.core_type = #tpu.core_type<tc>, window_params = [{transform_indices = @transform_0, window_bounds = array<i64: 128, 1>}, {pipeline_mode = #tpu.pipeline_mode<synchronous>, transform_indices = @transform_1, window_bounds = array<i64: 128, 128>}, {pipeline_mode = #tpu.pipeline_mode<synchronous>, transform_indices = @transform_2, window_bounds = array<i64: 5, 128, 128>}, {pipeline_mode = #tpu.pipeline_mode<synchronous>, transform_indices = @transform_3, window_bounds = array<i64: 1, 128>}, {pipeline_mode = #tpu.pipeline_mode<synchronous>, transform_indices = @transform_4, window_bounds = array<i64: 128, 128>}, {pipeline_mode = #tpu.pipeline_mode<synchronous>, transform_indices = @transform_5, window_bounds = array<i64: 1, 128>}, {pipeline_mode = #tpu.pipeline_mode<synchronous>, transform_indices = @transform_6, window_bounds = array<i64: 128, 128>}, {pipeline_mode = #tpu.pipeline_mode<synchronous>, transform_indices = @transform_7, window_bounds = array<i64: 1, 128>}, {transform_indices = @transform_8, window_bounds = array<i64: 8, 128>}]} {
    %c0 = arith.constant 0 : index
    %c0_0 = arith.constant 0 : index
    %0 = vector.load %arg1[%c0, %c0_0] : memref<128x1xi32, #tpu.memory_space<vmem>>, vector<128x1xi32>
    %1 = tpu.iota {dimensions = array<i32: 1>} : vector<128x128xi32>
    %2 = vector.broadcast %0 : vector<128x1xi32> to vector<128x128xi32>
    %3 = arith.cmpi eq, %1, %2 : vector<128x128xi32>
    %4 = arith.extui %3 : vector<128x128xi1> to vector<128x128xi32>
    %5 = arith.sitofp %4 : vector<128x128xi32> to vector<128x128xf32>
    %6 = arith.truncf %5 : vector<128x128xf32> to vector<128x128xbf16>
    %c0_1 = arith.constant 0 : index
    %c0_2 = arith.constant 0 : index
    %7 = vector.load %arg2[%c0_1, %c0_2] : memref<128x128xbf16, #tpu.memory_space<vmem>>, vector<128x128xbf16>
    %cst = arith.constant dense<0.000000e+00> : vector<128x128xf32>
    %8 = tpu.matmul %6, %7, %cst {dimension_numbers = #tpu.dot_dimension_numbers<[1], [0], [0], [1], [0, 0, 1, 1], [], []>} : vector<128x128xbf16>, vector<128x128xbf16>, vector<128x128xf32> -> vector<128x128xf32>
    %cst_3 = arith.constant 0.000000e+00 : f32
    %9 = vector.broadcast %cst_3 : f32 to vector<128x128xf32>
    %10 = arith.maximumf %8, %9 : vector<128x128xf32>
    %11 = tpu.iota {dimensions = array<i32: 0>} : vector<128x1xi32>
    %c16_i32 = arith.constant 16 : i32
    %c0_i32 = arith.constant 0 : i32
    %12 = arith.cmpi eq, %c16_i32, %c0_i32 : i32
    %c1_i32 = arith.constant 1 : i32
    %13 = arith.select %12, %c1_i32, %c16_i32 : i32
    %14 = vector.broadcast %13 : i32 to vector<128x1xi32>
    %15 = arith.remsi %11, %14 : vector<128x1xi32>
    %c0_i32_4 = arith.constant 0 : i32
    %16 = vector.broadcast %c0_i32_4 : i32 to vector<128x1xi32>
    %17 = arith.cmpi ne, %15, %16 : vector<128x1xi32>
    %c0_i32_5 = arith.constant 0 : i32
    %18 = vector.broadcast %c0_i32_5 : i32 to vector<128x1xi32>
    %19 = arith.cmpi slt, %15, %18 : vector<128x1xi32>
    %c0_i32_6 = arith.constant 0 : i32
    %20 = arith.cmpi slt, %13, %c0_i32_6 : i32
    %21 = vector.broadcast %20 : i1 to vector<128x1xi1>
    %22 = vector.broadcast %21 : vector<128x1xi1> to vector<128x1xi1>
    %23 = arith.xori %19, %22 : vector<128x1xi1>
    %24 = arith.andi %23, %17 : vector<128x1xi1>
    %25 = vector.broadcast %13 : i32 to vector<128x1xi32>
    %26 = arith.addi %15, %25 : vector<128x1xi32>
    %27 = arith.select %24, %26, %15 : vector<128x1xi1>, vector<128x1xi32>
    %c4_i32 = arith.constant 4 : i32
    %28 = vector.broadcast %c4_i32 : i32 to vector<128x1xi32>
    %29 = arith.cmpi slt, %27, %28 : vector<128x1xi32>
    %c4_i32_7 = arith.constant 4 : i32
    %30 = tpu.dynamic_rotate %10 by %c4_i32_7 dim 0 : vector<128x128xf32>, i32 -> vector<128x128xf32>
    %cst_8 = arith.constant 0.000000e+00 : f32
    %31 = vector.shape_cast %29 : vector<128x1xi1> to vector<128x1xi1>
    %32 = vector.broadcast %31 : vector<128x1xi1> to vector<128x128xi1>
    %33 = vector.broadcast %cst_8 : f32 to vector<128x128xf32>
    %34 = arith.select %32, %33, %30 : vector<128x128xi1>, vector<128x128xf32>
    %35 = arith.truncf %34 : vector<128x128xf32> to vector<128x128xbf16>
    %c0_9 = arith.constant 0 : index
    %c0_10 = arith.constant 0 : index
    %c0_11 = arith.constant 0 : index
    %36 = vector.load %arg3[%c0_9, %c0_10, %c0_11] : memref<5x128x128xbf16, #tpu.memory_space<vmem>>, vector<1x128x128xbf16>
    %37 = vector.shape_cast %36 : vector<1x128x128xbf16> to vector<128x128xbf16>
    %cst_12 = arith.constant dense<0.000000e+00> : vector<128x128xf32>
    %38 = tpu.matmul %35, %37, %cst_12 {dimension_numbers = #tpu.dot_dimension_numbers<[1], [0], [0], [1], [0, 0, 1, 1], [], []>} : vector<128x128xbf16>, vector<128x128xbf16>, vector<128x128xf32> -> vector<128x128xf32>
    %c3_i32 = arith.constant 3 : i32
    %39 = vector.broadcast %c3_i32 : i32 to vector<128x1xi32>
    %40 = arith.cmpi slt, %27, %39 : vector<128x1xi32>
    %c3_i32_13 = arith.constant 3 : i32
    %41 = tpu.dynamic_rotate %10 by %c3_i32_13 dim 0 : vector<128x128xf32>, i32 -> vector<128x128xf32>
    %cst_14 = arith.constant 0.000000e+00 : f32
    %42 = vector.shape_cast %40 : vector<128x1xi1> to vector<128x1xi1>
    %43 = vector.broadcast %42 : vector<128x1xi1> to vector<128x128xi1>
    %44 = vector.broadcast %cst_14 : f32 to vector<128x128xf32>
    %45 = arith.select %43, %44, %41 : vector<128x128xi1>, vector<128x128xf32>
    %46 = arith.truncf %45 : vector<128x128xf32> to vector<128x128xbf16>
    %c1 = arith.constant 1 : index
    %c0_15 = arith.constant 0 : index
    %c0_16 = arith.constant 0 : index
    %47 = vector.load %arg3[%c1, %c0_15, %c0_16] : memref<5x128x128xbf16, #tpu.memory_space<vmem>>, vector<1x128x128xbf16>
    %48 = vector.shape_cast %47 : vector<1x128x128xbf16> to vector<128x128xbf16>
    %cst_17 = arith.constant dense<0.000000e+00> : vector<128x128xf32>
    %49 = tpu.matmul %46, %48, %cst_17 {dimension_numbers = #tpu.dot_dimension_numbers<[1], [0], [0], [1], [0, 0, 1, 1], [], []>} : vector<128x128xbf16>, vector<128x128xbf16>, vector<128x128xf32> -> vector<128x128xf32>
    %50 = arith.addf %38, %49 : vector<128x128xf32>
    %c2_i32 = arith.constant 2 : i32
    %51 = vector.broadcast %c2_i32 : i32 to vector<128x1xi32>
    %52 = arith.cmpi slt, %27, %51 : vector<128x1xi32>
    %c2_i32_18 = arith.constant 2 : i32
    %53 = tpu.dynamic_rotate %10 by %c2_i32_18 dim 0 : vector<128x128xf32>, i32 -> vector<128x128xf32>
    %cst_19 = arith.constant 0.000000e+00 : f32
    %54 = vector.shape_cast %52 : vector<128x1xi1> to vector<128x1xi1>
    %55 = vector.broadcast %54 : vector<128x1xi1> to vector<128x128xi1>
    %56 = vector.broadcast %cst_19 : f32 to vector<128x128xf32>
    %57 = arith.select %55, %56, %53 : vector<128x128xi1>, vector<128x128xf32>
    %58 = arith.truncf %57 : vector<128x128xf32> to vector<128x128xbf16>
    %c2 = arith.constant 2 : index
    %c0_20 = arith.constant 0 : index
    %c0_21 = arith.constant 0 : index
    %59 = vector.load %arg3[%c2, %c0_20, %c0_21] : memref<5x128x128xbf16, #tpu.memory_space<vmem>>, vector<1x128x128xbf16>
    %60 = vector.shape_cast %59 : vector<1x128x128xbf16> to vector<128x128xbf16>
    %cst_22 = arith.constant dense<0.000000e+00> : vector<128x128xf32>
    %61 = tpu.matmul %58, %60, %cst_22 {dimension_numbers = #tpu.dot_dimension_numbers<[1], [0], [0], [1], [0, 0, 1, 1], [], []>} : vector<128x128xbf16>, vector<128x128xbf16>, vector<128x128xf32> -> vector<128x128xf32>
    %62 = arith.addf %50, %61 : vector<128x128xf32>
    %c1_i32_23 = arith.constant 1 : i32
    %63 = vector.broadcast %c1_i32_23 : i32 to vector<128x1xi32>
    %64 = arith.cmpi slt, %27, %63 : vector<128x1xi32>
    %c1_i32_24 = arith.constant 1 : i32
    %65 = tpu.dynamic_rotate %10 by %c1_i32_24 dim 0 : vector<128x128xf32>, i32 -> vector<128x128xf32>
    %cst_25 = arith.constant 0.000000e+00 : f32
    %66 = vector.shape_cast %64 : vector<128x1xi1> to vector<128x1xi1>
    %67 = vector.broadcast %66 : vector<128x1xi1> to vector<128x128xi1>
    %68 = vector.broadcast %cst_25 : f32 to vector<128x128xf32>
    %69 = arith.select %67, %68, %65 : vector<128x128xi1>, vector<128x128xf32>
    %70 = arith.truncf %69 : vector<128x128xf32> to vector<128x128xbf16>
    %c3 = arith.constant 3 : index
    %c0_26 = arith.constant 0 : index
    %c0_27 = arith.constant 0 : index
    %71 = vector.load %arg3[%c3, %c0_26, %c0_27] : memref<5x128x128xbf16, #tpu.memory_space<vmem>>, vector<1x128x128xbf16>
    %72 = vector.shape_cast %71 : vector<1x128x128xbf16> to vector<128x128xbf16>
    %cst_28 = arith.constant dense<0.000000e+00> : vector<128x128xf32>
    %73 = tpu.matmul %70, %72, %cst_28 {dimension_numbers = #tpu.dot_dimension_numbers<[1], [0], [0], [1], [0, 0, 1, 1], [], []>} : vector<128x128xbf16>, vector<128x128xbf16>, vector<128x128xf32> -> vector<128x128xf32>
    %74 = arith.addf %62, %73 : vector<128x128xf32>
    %75 = arith.truncf %10 : vector<128x128xf32> to vector<128x128xbf16>
    %c4 = arith.constant 4 : index
    %c0_29 = arith.constant 0 : index
    %c0_30 = arith.constant 0 : index
    %76 = vector.load %arg3[%c4, %c0_29, %c0_30] : memref<5x128x128xbf16, #tpu.memory_space<vmem>>, vector<1x128x128xbf16>
    %77 = vector.shape_cast %76 : vector<1x128x128xbf16> to vector<128x128xbf16>
    %cst_31 = arith.constant dense<0.000000e+00> : vector<128x128xf32>
    %78 = tpu.matmul %75, %77, %cst_31 {dimension_numbers = #tpu.dot_dimension_numbers<[1], [0], [0], [1], [0, 0, 1, 1], [], []>} : vector<128x128xbf16>, vector<128x128xbf16>, vector<128x128xf32> -> vector<128x128xf32>
    %79 = arith.addf %74, %78 : vector<128x128xf32>
    %c0_32 = arith.constant 0 : index
    %c0_33 = arith.constant 0 : index
    %80 = vector.load %arg4[%c0_32, %c0_33] : memref<1x128xf32, #tpu.memory_space<vmem>>, vector<1x128xf32>
    %81 = vector.broadcast %80 : vector<1x128xf32> to vector<128x128xf32>
    %82 = arith.addf %79, %81 : vector<128x128xf32>
    %cst_34 = arith.constant 0.000000e+00 : f32
    %83 = vector.broadcast %cst_34 : f32 to vector<128x128xf32>
    %84 = arith.maximumf %82, %83 : vector<128x128xf32>
    %85 = vector.shape_cast %84 : vector<128x128xf32> to vector<8x16x128xf32>
    %cst_35 = arith.constant dense<0xFF800000> : vector<8x128xf32>
    %86 = vector.multi_reduction <maximumf>, %85, %cst_35 [1] : vector<8x16x128xf32> to vector<8x128xf32>
    %87 = arith.truncf %86 : vector<8x128xf32> to vector<8x128xbf16>
    %c0_36 = arith.constant 0 : index
    %c0_37 = arith.constant 0 : index
    %88 = vector.load %arg5[%c0_36, %c0_37] : memref<128x128xbf16, #tpu.memory_space<vmem>>, vector<128x128xbf16>
    %cst_38 = arith.constant dense<0.000000e+00> : vector<8x128xf32>
    %89 = tpu.matmul %87, %88, %cst_38 {dimension_numbers = #tpu.dot_dimension_numbers<[1], [0], [0], [1], [0, 0, 1, 1], [], []>} : vector<8x128xbf16>, vector<128x128xbf16>, vector<8x128xf32> -> vector<8x128xf32>
    %c0_39 = arith.constant 0 : index
    %c0_40 = arith.constant 0 : index
    %90 = vector.load %arg6[%c0_39, %c0_40] : memref<1x128xf32, #tpu.memory_space<vmem>>, vector<1x128xf32>
    %91 = vector.broadcast %90 : vector<1x128xf32> to vector<8x128xf32>
    %92 = arith.addf %89, %91 : vector<8x128xf32>
    %cst_41 = arith.constant 0.000000e+00 : f32
    %93 = vector.broadcast %cst_41 : f32 to vector<8x128xf32>
    %94 = arith.maximumf %92, %93 : vector<8x128xf32>
    %95 = arith.truncf %94 : vector<8x128xf32> to vector<8x128xbf16>
    %c0_42 = arith.constant 0 : index
    %c0_43 = arith.constant 0 : index
    %96 = vector.load %arg7[%c0_42, %c0_43] : memref<128x128xbf16, #tpu.memory_space<vmem>>, vector<128x128xbf16>
    %cst_44 = arith.constant dense<0.000000e+00> : vector<8x128xf32>
    %97 = tpu.matmul %95, %96, %cst_44 {dimension_numbers = #tpu.dot_dimension_numbers<[1], [0], [0], [1], [0, 0, 1, 1], [], []>} : vector<8x128xbf16>, vector<128x128xbf16>, vector<8x128xf32> -> vector<8x128xf32>
    %c0_45 = arith.constant 0 : index
    %c0_46 = arith.constant 0 : index
    %98 = vector.load %arg8[%c0_45, %c0_46] : memref<1x128xf32, #tpu.memory_space<vmem>>, vector<1x128xf32>
    %99 = vector.broadcast %98 : vector<1x128xf32> to vector<8x128xf32>
    %100 = arith.addf %97, %99 : vector<8x128xf32>
    %c0_47 = arith.constant 0 : index
    %c0_48 = arith.constant 0 : index
    %101 = vector.load %arg9[%c0_47, %c0_48] : memref<8x128xf32, #tpu.memory_space<vmem>>, vector<8x128xf32>
    tpu.vector_store %arg9[%c0_47, %c0_48], %100 {strides = array<i32>} : memref<8x128xf32, #tpu.memory_space<vmem>>, vector<8x128xf32>,
    return
  }
  func.func @transform_0(%arg0: i32) -> (i32, i32) {
    %c0_i32 = arith.constant 0 : i32
    %c0_i32_0 = arith.constant 0 : i32
    return %arg0, %c0_i32 : i32, i32
  }
  func.func @transform_1(%arg0: i32) -> (i32, i32) {
    %c0_i32 = arith.constant 0 : i32
    %c0_i32_0 = arith.constant 0 : i32
    %c0_i32_1 = arith.constant 0 : i32
    return %c0_i32, %c0_i32_0 : i32, i32
  }
  func.func @transform_2(%arg0: i32) -> (i32, i32, i32) {
    %c0_i32 = arith.constant 0 : i32
    %c0_i32_0 = arith.constant 0 : i32
    %c0_i32_1 = arith.constant 0 : i32
    %c0_i32_2 = arith.constant 0 : i32
    return %c0_i32, %c0_i32_0, %c0_i32_1 : i32, i32, i32
  }
  func.func @transform_3(%arg0: i32) -> (i32, i32) {
    %c0_i32 = arith.constant 0 : i32
    %c0_i32_0 = arith.constant 0 : i32
    %c0_i32_1 = arith.constant 0 : i32
    return %c0_i32, %c0_i32_0 : i32, i32
  }
  func.func @transform_4(%arg0: i32) -> (i32, i32) {
    %c0_i32 = arith.constant 0 : i32
    %c0_i32_0 = arith.constant 0 : i32
    %c0_i32_1 = arith.constant 0 : i32
    return %c0_i32, %c0_i32_0 : i32, i32
  }
  func.func @transform_5(%arg0: i32) -> (i32, i32) {
    %c0_i32 = arith.constant 0 : i32
    %c0_i32_0 = arith.constant 0 : i32
    %c0_i32_1 = arith.constant 0 : i32
    return %c0_i32, %c0_i32_0 : i32, i32
  }
  func.func @transform_6(%arg0: i32) -> (i32, i32) {
    %c0_i32 = arith.constant 0 : i32
    %c0_i32_0 = arith.constant 0 : i32
    %c0_i32_1 = arith.constant 0 : i32
    return %c0_i32, %c0_i32_0 : i32, i32
  }
  func.func @transform_7(%arg0: i32) -> (i32, i32) {
    %c0_i32 = arith.constant 0 : i32
    %c0_i32_0 = arith.constant 0 : i32
    %c0_i32_1 = arith.constant 0 : i32
    return %c0_i32, %c0_i32_0 : i32, i32
  }
  func.func @transform_8(%arg0: i32) -> (i32, i32) {
    %c0_i32 = arith.constant 0 : i32
    %c0_i32_0 = arith.constant 0 : i32
    return %arg0, %c0_i32 : i32, i32
  }
}

</mosaic_0001>

<llo_original>
// kernel: tpu_custom_call.1
$region0: #{tpu_custom_call.1}
  #allocation0 [shape = 'u32[]', space=smem, size = 0x4, offset = 0x4, fixed_abs, tag = 'smem constant byte address 0x4 - core index']
  #allocation1 [shape = 'u32[144,128]{1,0:T(1,128)}', space=vmem, size = 0x12000, scoped, tag = 'internal scratch']
  %s0 = inlined_call_operand.vmem [shape: s32[256,1], index: 0, kind: input, shape index: {}]
  %s1 = inlined_call_operand.vmem [shape: bf16[128,128], index: 1, kind: input, shape index: {}]
  %s2 = inlined_call_operand.hbm [shape: bf16[5,128,128], index: 2, kind: input, shape index: {}]
  %s3 = inlined_call_operand.vmem [shape: f32[1,128], index: 3, kind: input, shape index: {}]
  %s4 = inlined_call_operand.vmem [shape: bf16[128,128], index: 4, kind: input, shape index: {}]
  %s5 = inlined_call_operand.vmem [shape: f32[1,128], index: 5, kind: input, shape index: {}]
  %s6 = inlined_call_operand.vmem [shape: bf16[128,128], index: 6, kind: input, shape index: {}]
  %s7 = inlined_call_operand.vmem [shape: f32[1,128], index: 7, kind: input, shape index: {}]
  %s8 = inlined_call_operand.hbm [shape: f32[16,128], index: 8, kind: output, shape index: {}]
  %s9 = sld [smem:[#allocation0]]
  $region69: #{tpu_custom_call.1} parent=0
    _
  %s11 = ssub.s32 1, %s9
  %s12 = scalar_select 0, %s11, %s9
  $region1: #{tpu_custom_call.1} parent=0
    #allocation2 [shape = 'u8[163840]{0}', space=vmem, size = 0x28000, scoped, tag = 'input window, operand 2, single buffered']
    #allocation3 [shape = 's32[2]{0}', space=sflag, size = 0x8, scoped, tag = 'scoped memory for tpu_custom_call.1']
    #allocation4 [shape = 's32[2]{0}', space=sflag, size = 0x8, scoped, tag = 'scoped memory for tpu_custom_call.1']
    #allocation5 [shape = 'u8[8192]{0}', space=vmem, size = 0x2000, scoped, tag = 'output window, operand 0']
    %13 = vsyncpa [#allocation3], 0
    %14 = vsyncpa [#allocation4], 0
    %s15 = scalar_lea.sflag [#allocation4], 1
    %16 = vsyncpa %s15, 0
    loop: start=0, step=1, limit=4
    $region2: #{tpu_custom_call.1} parent=1 // loop_pre_header
      _
    $region3: #{tpu_custom_call.1} parent=1 // loop_header
      %s18 = sphi 0, %s22
      %p19 = scmp.ge.s32.totalorder %s18, 4
      %s28 = sphi 0, %s30
      %s31 = sphi 0, %s28
      %s32 = sphi 0, %s31
      %s48 = sphi 0, %s32
      %s52 = sphi 0, %s52
      %s54 = sphi 0, %s52
      %s55 = sphi 0, %s54
      %s69 = sphi 0, %s55
      %s73 = sphi 0, %s73
      %s75 = sphi 0, %s73
      %s76 = sphi 0, %s75
      %s90 = sphi 0, %s76
      %s94 = sphi 0, %s94
      %s96 = sphi 0, %s94
      %s97 = sphi 0, %s96
      %s111 = sphi 0, %s97
      %s115 = sphi 0, %s115
      %s117 = sphi 0, %s115
      %s118 = sphi 0, %s117
      %s132 = sphi 0, %s118
      %s136 = sphi 0, %s136
      %s138 = sphi 0, %s136
      %s139 = sphi 0, %s138
      %s153 = sphi 0, %s139
      %s157 = sphi 0, %s157
      %s159 = sphi 0, %s157
      %s160 = sphi 0, %s159
      %s174 = sphi 0, %s160
      %s178 = sphi 0, %s178
      %s180 = sphi 0, %s178
      %s181 = sphi 0, %s180
      %s195 = sphi 0, %s181
      %s201 = sphi 0, %s203
      %s204 = sphi 0, %s201
      %s205 = sphi 0, %s204
      %s221 = sphi 0, %s205
    $region4: #{tpu_custom_call.1} parent=1 // loop_header_branch
      %21 = sbr.rel (%p19) target = $region8
    $region5: #{tpu_custom_call.1} parent=1 // loop_body
      %s23 = ssub.s32 %s18, 1
      %s24 = ssub.s32 %s18, 2
      %s25 = sadd.s32 %s18, 1
      %s26 = ssub.s32 %s18, %s25
      %p27 = scmp.eq.s32.totalorder %s26, 0
      %s29 = sadd.s32 %s28, 1
      %s30 = scalar_select %p27, %s28, %s29
      %p33 = pneg %p27
      %p34 = scmp.eq.s32.totalorder %s18, 1
      %p35 = por %p33, %p34
      %p36 = scmp.ne.s32.totalorder %s28, %s31
      %p37 = scmp.eq.s32.totalorder %s18, 0
      %p38 = por %p36, %p37
      %p39 = scmp.ne.s32.totalorder %s28, %s31
      %p40 = scmp.eq.s32.totalorder %s23, 1
      %p41 = por %p39, %p40
      %p42 = scmp.ne.s32.totalorder %s31, %s32
      %p43 = scmp.eq.s32.totalorder %s23, 0
      %p44 = por %p42, %p43
      %p45 = scmp.ne.s32.totalorder %s31, %s32
      %p46 = scmp.eq.s32.totalorder %s24, 1
      %p47 = por %p45, %p46
      %p49 = scmp.ne.s32.totalorder %s32, %s48
      %p50 = scmp.eq.s32.totalorder %s24, 0
      %p51 = por %p49, %p50
      %s53 = sadd.s32 %s52, 1
      %p56 = scmp.eq.s32.totalorder %s18, 1
      %p57 = scmp.ne.s32.totalorder %s52, %s54
      %p58 = scmp.eq.s32.totalorder %s18, 0
      %p59 = por %p57, %p58
      %p60 = scmp.ne.s32.totalorder %s52, %s54
      %p61 = scmp.eq.s32.totalorder %s23, 1
      %p62 = por %p60, %p61
      %p63 = scmp.ne.s32.totalorder %s54, %s55
      %p64 = scmp.eq.s32.totalorder %s23, 0
      %p65 = por %p63, %p64
      %p66 = scmp.ne.s32.totalorder %s54, %s55
      %p67 = scmp.eq.s32.totalorder %s24, 1
      %p68 = por %p66, %p67
      %p70 = scmp.ne.s32.totalorder %s55, %s69
      %p71 = scmp.eq.s32.totalorder %s24, 0
      %p72 = por %p70, %p71
      %s74 = sadd.s32 %s73, 1
      %p77 = scmp.eq.s32.totalorder %s18, 1
      %p78 = scmp.ne.s32.totalorder %s73, %s75
      %p79 = scmp.eq.s32.totalorder %s18, 0
      %p80 = por %p78, %p79
      %p81 = scmp.ne.s32.totalorder %s73, %s75
      %p82 = scmp.eq.s32.totalorder %s23, 1
      %p83 = por %p81, %p82
      %p84 = scmp.ne.s32.totalorder %s75, %s76
      %p85 = scmp.eq.s32.totalorder %s23, 0
      %p86 = por %p84, %p85
      %p87 = scmp.ne.s32.totalorder %s75, %s76
      %p88 = scmp.eq.s32.totalorder %s24, 1
      %p89 = por %p87, %p88
      %p91 = scmp.ne.s32.totalorder %s76, %s90
      %p92 = scmp.eq.s32.totalorder %s24, 0
      %p93 = por %p91, %p92
      %s95 = sadd.s32 %s94, 1
      %p98 = scmp.eq.s32.totalorder %s18, 1
      %p99 = scmp.ne.s32.totalorder %s94, %s96
      %p100 = scmp.eq.s32.totalorder %s18, 0
      %p101 = por %p99, %p100
      %p102 = scmp.ne.s32.totalorder %s94, %s96
      %p103 = scmp.eq.s32.totalorder %s23, 1
      %p104 = por %p102, %p103
      %p105 = scmp.ne.s32.totalorder %s96, %s97
      %p106 = scmp.eq.s32.totalorder %s23, 0
      %p107 = por %p105, %p106
      %p108 = scmp.ne.s32.totalorder %s96, %s97
      %p109 = scmp.eq.s32.totalorder %s24, 1
      %p110 = por %p108, %p109
      %p112 = scmp.ne.s32.totalorder %s97, %s111
      %p113 = scmp.eq.s32.totalorder %s24, 0
      %p114 = por %p112, %p113
      %s116 = sadd.s32 %s115, 1
      %p119 = scmp.eq.s32.totalorder %s18, 1
      %p120 = scmp.ne.s32.totalorder %s115, %s117
      %p121 = scmp.eq.s32.totalorder %s18, 0
      %p122 = por %p120, %p121
      %p123 = scmp.ne.s32.totalorder %s115, %s117
      %p124 = scmp.eq.s32.totalorder %s23, 1
      %p125 = por %p123, %p124
      %p126 = scmp.ne.s32.totalorder %s117, %s118
      %p127 = scmp.eq.s32.totalorder %s23, 0
      %p128 = por %p126, %p127
      %p129 = scmp.ne.s32.totalorder %s117, %s118
      %p130 = scmp.eq.s32.totalorder %s24, 1
      %p131 = por %p129, %p130
      %p133 = scmp.ne.s32.totalorder %s118, %s132
      %p134 = scmp.eq.s32.totalorder %s24, 0
      %p135 = por %p133, %p134
      %s137 = sadd.s32 %s136, 1
      %p140 = scmp.eq.s32.totalorder %s18, 1
      %p141 = scmp.ne.s32.totalorder %s136, %s138
      %p142 = scmp.eq.s32.totalorder %s18, 0
      %p143 = por %p141, %p142
      %p144 = scmp.ne.s32.totalorder %s136, %s138
      %p145 = scmp.eq.s32.totalorder %s23, 1
      %p146 = por %p144, %p145
      %p147 = scmp.ne.s32.totalorder %s138, %s139
      %p148 = scmp.eq.s32.totalorder %s23, 0
      %p149 = por %p147, %p148
      %p150 = scmp.ne.s32.totalorder %s138, %s139
      %p151 = scmp.eq.s32.totalorder %s24, 1
      %p152 = por %p150, %p151
      %p154 = scmp.ne.s32.totalorder %s139, %s153
      %p155 = scmp.eq.s32.totalorder %s24, 0
      %p156 = por %p154, %p155
      %s158 = sadd.s32 %s157, 1
      %p161 = scmp.eq.s32.totalorder %s18, 1
      %p162 = scmp.ne.s32.totalorder %s157, %s159
      %p163 = scmp.eq.s32.totalorder %s18, 0
      %p164 = por %p162, %p163
      %p165 = scmp.ne.s32.totalorder %s157, %s159
      %p166 = scmp.eq.s32.totalorder %s23, 1
      %p167 = por %p165, %p166
      %p168 = scmp.ne.s32.totalorder %s159, %s160
      %p169 = scmp.eq.s32.totalorder %s23, 0
      %p170 = por %p168, %p169
      %p171 = scmp.ne.s32.totalorder %s159, %s160
      %p172 = scmp.eq.s32.totalorder %s24, 1
      %p173 = por %p171, %p172
      %p175 = scmp.ne.s32.totalorder %s160, %s174
      %p176 = scmp.eq.s32.totalorder %s24, 0
      %p177 = por %p175, %p176
      %s179 = sadd.s32 %s178, 1
      %p182 = scmp.eq.s32.totalorder %s18, 1
      %p183 = scmp.ne.s32.totalorder %s178, %s180
      %p184 = scmp.eq.s32.totalorder %s18, 0
      %p185 = por %p183, %p184
      %p186 = scmp.ne.s32.totalorder %s178, %s180
      %p187 = scmp.eq.s32.totalorder %s23, 1
      %p188 = por %p186, %p187
      %p189 = scmp.ne.s32.totalorder %s180, %s181
      %p190 = scmp.eq.s32.totalorder %s23, 0
      %p191 = por %p189, %p190
      %p192 = scmp.ne.s32.totalorder %s180, %s181
      %p193 = scmp.eq.s32.totalorder %s24, 1
      %p194 = por %p192, %p193
      %p196 = scmp.ne.s32.totalorder %s181, %s195
      %p197 = scmp.eq.s32.totalorder %s24, 0
      %p198 = por %p196, %p197
      %s199 = ssub.s32 %s18, %s25
      %p200 = scmp.eq.s32.totalorder %s199, 0
      %s202 = sadd.s32 %s201, 1
      %s203 = scalar_select %p200, %s201, %s202
      %p206 = pneg %p200
      %p207 = scmp.eq.s32.totalorder %s18, 1
      %p208 = por %p206, %p207
      %p209 = scmp.ne.s32.totalorder %s201, %s204
      %p210 = scmp.eq.s32.totalorder %s18, 0
      %p211 = por %p209, %p210
      %p212 = scmp.ne.s32.totalorder %s201, %s204
      %p213 = scmp.eq.s32.totalorder %s23, 1
      %p214 = por %p212, %p213
      %p215 = scmp.ne.s32.totalorder %s204, %s205
      %p216 = scmp.eq.s32.totalorder %s23, 0
      %p217 = por %p215, %p216
      %p218 = scmp.ne.s32.totalorder %s204, %s205
      %p219 = scmp.eq.s32.totalorder %s24, 1
      %p220 = por %p218, %p219
      %p222 = scmp.ne.s32.totalorder %s205, %s221
      %p223 = scmp.eq.s32.totalorder %s24, 0
      %p224 = por %p222, %p223
      %p225 = scmp.le.s32.totalorder 1, %s18
      %p226 = scmp.lt.s32.totalorder %s18, 3
      %p227 = pnand %p225, %p226
      %p228 = pneg %p227
      // Predicated region
      $region9: #{tpu_custom_call.1} parent=5 // pred_check
        _
      $region10: #{tpu_custom_call.1} parent=5 // pred_check_branch
        %230 = sbr.rel (%p227) target = $region12
      $region11: #{tpu_custom_call.1} parent=5 // pred_region
        %s231 = ssub.s32 %s18, 1
        // Predicated region
        $region13: #{tpu_custom_call.1} parent=11 // pred_check
          %p232 = pneg %p65
        $region14: #{tpu_custom_call.1} parent=11 // pred_check_branch
          %234 = sbr.rel (%p232) target = $region16
        $region15: #{tpu_custom_call.1} parent=11 // pred_region
          _
        $region16: #{tpu_custom_call.1} parent=11 // pred_fallthru
          _
        // Predicated region
        $region17: #{tpu_custom_call.1} parent=11 // pred_check
          %p235 = pneg %p86
        $region18: #{tpu_custom_call.1} parent=11 // pred_check_branch
          %237 = sbr.rel (%p235) target = $region20
        $region19: #{tpu_custom_call.1} parent=11 // pred_region
          %s239 = ssub.s32 5120, 5120
          %240 = vsyncadd [#allocation3], %s239
          %s241 = sshll.u32 [#allocation2], 4
          %s242 = int_to_ptr.vmem [resolvable:$true] %s241
          %247 = dma.hbm_to_vmem [thread:$0]  %s2, 5120, %s242, [#allocation3], 64, 64, 4
        $region20: #{tpu_custom_call.1} parent=11 // pred_fallthru
          _
        // Predicated region
        $region21: #{tpu_custom_call.1} parent=11 // pred_check
          %p248 = pneg %p107
        $region22: #{tpu_custom_call.1} parent=11 // pred_check_branch
          %250 = sbr.rel (%p248) target = $region24
        $region23: #{tpu_custom_call.1} parent=11 // pred_region
          _
        $region24: #{tpu_custom_call.1} parent=11 // pred_fallthru
          _
        // Predicated region
        $region25: #{tpu_custom_call.1} parent=11 // pred_check
          %p251 = pneg %p128
        $region26: #{tpu_custom_call.1} parent=11 // pred_check_branch
          %253 = sbr.rel (%p251) target = $region28
        $region27: #{tpu_custom_call.1} parent=11 // pred_region
          _
        $region28: #{tpu_custom_call.1} parent=11 // pred_fallthru
          _
        // Predicated region
        $region29: #{tpu_custom_call.1} parent=11 // pred_check
          %p254 = pneg %p149
        $region30: #{tpu_custom_call.1} parent=11 // pred_check_branch
          %256 = sbr.rel (%p254) target = $region32
        $region31: #{tpu_custom_call.1} parent=11 // pred_region
          _
        $region32: #{tpu_custom_call.1} parent=11 // pred_fallthru
          _
        // Predicated region
        $region33: #{tpu_custom_call.1} parent=11 // pred_check
          %p257 = pneg %p170
        $region34: #{tpu_custom_call.1} parent=11 // pred_check_branch
          %259 = sbr.rel (%p257) target = $region36
        $region35: #{tpu_custom_call.1} parent=11 // pred_region
          _
        $region36: #{tpu_custom_call.1} parent=11 // pred_fallthru
          _
        // Predicated region
        $region37: #{tpu_custom_call.1} parent=11 // pred_check
          %p260 = pneg %p191
        $region38: #{tpu_custom_call.1} parent=11 // pred_check_branch
          %262 = sbr.rel (%p260) target = $region40
        $region39: #{tpu_custom_call.1} parent=11 // pred_region
          _
        $region40: #{tpu_custom_call.1} parent=11 // pred_fallthru
          _
      $region12: #{tpu_custom_call.1} parent=5 // pred_fallthru
        _
      %p263 = scmp.lt.s32.totalorder %s18, 2
      // Predicated region
      $region41: #{tpu_custom_call.1} parent=5 // pred_check
        %p264 = pneg %p263
      $region42: #{tpu_custom_call.1} parent=5 // pred_check_branch
        %266 = sbr.rel (%p264) target = $region44
      $region43: #{tpu_custom_call.1} parent=5 // pred_region
        // Predicated region
        $region45: #{tpu_custom_call.1} parent=43 // pred_check
          %p267 = pneg %p38
        $region46: #{tpu_custom_call.1} parent=43 // pred_check_branch
          %269 = sbr.rel (%p267) target = $region48
        $region47: #{tpu_custom_call.1} parent=43 // pred_region
          %s270 = smul.u32 16, %s18
          %p271 = scmp.lt.s32.totalorder %s270, 31
          %s272 = scalar_select %p271, %s270, 31
          %s273 = smul.addr %s272, 8
          %s274 = scalar_lea.vmem %s0, %s273
          %s275 = smul.u32 16, %s18
        $region48: #{tpu_custom_call.1} parent=43 // pred_fallthru
          _
      $region44: #{tpu_custom_call.1} parent=5 // pred_fallthru
        _
      %p276 = scmp.le.s32.totalorder 1, %s18
      %p277 = scmp.lt.s32.totalorder %s18, 3
      %p278 = pnand %p276, %p277
      %p279 = pneg %p278
      // Predicated region
      $region49: #{tpu_custom_call.1} parent=5 // pred_check
        _
      $region50: #{tpu_custom_call.1} parent=5 // pred_check_branch
        %281 = sbr.rel (%p278) target = $region52
      $region51: #{tpu_custom_call.1} parent=5 // pred_region
        %s282 = ssub.s32 %s18, 1
        // Predicated region
        $region53: #{tpu_custom_call.1} parent=51 // pred_check
          %p283 = pneg %p86
        $region54: #{tpu_custom_call.1} parent=51 // pred_check_branch
          %285 = sbr.rel (%p283) target = $region56
        $region55: #{tpu_custom_call.1} parent=51 // pred_region
          %286 = dma.done [#allocation3], 5120
        $region56: #{tpu_custom_call.1} parent=51 // pred_fallthru
          _
        %s287 = smul.u32 16, %s23
        %p288 = scmp.lt.s32.totalorder %s287, 31
        %s289 = scalar_select %p288, %s287, 31
        %s290 = smul.addr %s289, 8
        %s291 = scalar_lea.vmem %s0, %s290
        %p292 = pneg %p44
        %p293 = pneg %p41
        %p294 = pneg %p65
        %p295 = pneg %p62
        %p296 = pneg %p86
        %p297 = pneg %p83
        %p298 = pneg %p107
        %p299 = pneg %p104
        %p300 = pneg %p128
        %p301 = pneg %p125
        %p302 = pneg %p149
        %p303 = pneg %p146
        %p304 = pneg %p170
        %p305 = pneg %p167
        %p306 = pneg %p191
        %p307 = pneg %p188
        %p308 = pneg %p217
        %p309 = pneg %p214
        %s310 = sand.u32 %s204, 1
        %s311 = scalar_lea.sflag [#allocation4], %s310
        %s312 = sand.u32 %s204, 1
        %s313 = smul.addr %s312, 8
        %s314 = scalar_lea.vmem [#allocation5], %s313
        %s315 = smul.u32 16, %s23
        %p316 = scmp.lt.s32.totalorder %s315, 31
        %s317 = scalar_select %p316, %s315, 31
        %s318 = smul.addr %s317, 8
        %s319 = scalar_lea.vmem %s0, %s318
        %s320 = smul.u32 16, %s23
        %v322 = vld [vmem:[%s319] sm:$0xff]
        %v323 = vld [vmem:[%s319 + $0x8] sm:$0xff]
        %v324 = vld [vmem:[%s319 + $0x10] sm:$0xff]
        %v325 = vld [vmem:[%s319 + $0x18] sm:$0xff]
        %v326 = vld [vmem:[%s319 + $0x20] sm:$0xff]
        %v327 = vld [vmem:[%s319 + $0x28] sm:$0xff]
        %v328 = vld [vmem:[%s319 + $0x30] sm:$0xff]
        %v329 = vld [vmem:[%s319 + $0x38] sm:$0xff]
        %v330 = vld [vmem:[%s319 + $0x40] sm:$0xff]
        %v331 = vld [vmem:[%s319 + $0x48] sm:$0xff]
        %v332 = vld [vmem:[%s319 + $0x50] sm:$0xff]
        %v333 = vld [vmem:[%s319 + $0x58] sm:$0xff]
        %v334 = vld [vmem:[%s319 + $0x60] sm:$0xff]
        %v335 = vld [vmem:[%s319 + $0x68] sm:$0xff]
        %v336 = vld [vmem:[%s319 + $0x70] sm:$0xff]
        %v337 = vld [vmem:[%s319 + $0x78] sm:$0xff]
        %v338 = vlaneseq
        %v339 = vand.u32 %v338, 127
        %340 = vset.pattern.permute.xlu0 0
        %341 = vperm.xlu0 %340, %v322
        %v342 = vpop.permute.xlu0 %341
        %343 = vset.pattern.permute.xlu0 0
        %344 = vperm.xlu0 %343, %v323
        %v345 = vpop.permute.xlu0 %344
        %346 = vset.pattern.permute.xlu0 0
        %347 = vperm.xlu0 %346, %v324
        %v348 = vpop.permute.xlu0 %347
        %349 = vset.pattern.permute.xlu0 0
        %350 = vperm.xlu0 %349, %v325
        %v351 = vpop.permute.xlu0 %350
        %352 = vset.pattern.permute.xlu0 0
        %353 = vperm.xlu0 %352, %v326
        %v354 = vpop.permute.xlu0 %353
        %355 = vset.pattern.permute.xlu0 0
        %356 = vperm.xlu0 %355, %v327
        %v357 = vpop.permute.xlu0 %356
        %358 = vset.pattern.permute.xlu0 0
        %359 = vperm.xlu0 %358, %v328
        %v360 = vpop.permute.xlu0 %359
        %361 = vset.pattern.permute.xlu0 0
        %362 = vperm.xlu0 %361, %v329
        %v363 = vpop.permute.xlu0 %362
        %364 = vset.pattern.permute.xlu0 0
        %365 = vperm.xlu0 %364, %v330
        %v366 = vpop.permute.xlu0 %365
        %367 = vset.pattern.permute.xlu0 0
        %368 = vperm.xlu0 %367, %v331
        %v369 = vpop.permute.xlu0 %368
        %370 = vset.pattern.permute.xlu0 0
        %371 = vperm.xlu0 %370, %v332
        %v372 = vpop.permute.xlu0 %371
        %373 = vset.pattern.permute.xlu0 0
        %374 = vperm.xlu0 %373, %v333
        %v375 = vpop.permute.xlu0 %374
        %376 = vset.pattern.permute.xlu0 0
        %377 = vperm.xlu0 %376, %v334
        %v378 = vpop.permute.xlu0 %377
        %379 = vset.pattern.permute.xlu0 0
        %380 = vperm.xlu0 %379, %v335
        %v381 = vpop.permute.xlu0 %380
        %382 = vset.pattern.permute.xlu0 0
        %383 = vperm.xlu0 %382, %v336
        %v384 = vpop.permute.xlu0 %383
        %385 = vset.pattern.permute.xlu0 0
        %386 = vperm.xlu0 %385, %v337
        %v387 = vpop.permute.xlu0 %386
        %vm388 = vcmp.eq.s32.totalorder %v339, %v342
        %vm389 = vcmp.eq.s32.totalorder %v339, %v345
        %vm390 = vcmp.eq.s32.totalorder %v339, %v348
        %vm391 = vcmp.eq.s32.totalorder %v339, %v351
        %vm392 = vcmp.eq.s32.totalorder %v339, %v354
        %vm393 = vcmp.eq.s32.totalorder %v339, %v357
        %vm394 = vcmp.eq.s32.totalorder %v339, %v360
        %vm395 = vcmp.eq.s32.totalorder %v339, %v363
        %vm396 = vcmp.eq.s32.totalorder %v339, %v366
        %vm397 = vcmp.eq.s32.totalorder %v339, %v369
        %vm398 = vcmp.eq.s32.totalorder %v339, %v372
        %vm399 = vcmp.eq.s32.totalorder %v339, %v375
        %vm400 = vcmp.eq.s32.totalorder %v339, %v378
        %vm401 = vcmp.eq.s32.totalorder %v339, %v381
        %vm402 = vcmp.eq.s32.totalorder %v339, %v384
        %vm403 = vcmp.eq.s32.totalorder %v339, %v387
        %v404 = vsel %vm388, 1, 0
        %v405 = vsel %vm389, 1, 0
        %v406 = vsel %vm390, 1, 0
        %v407 = vsel %vm391, 1, 0
        %v408 = vsel %vm392, 1, 0
        %v409 = vsel %vm393, 1, 0
        %v410 = vsel %vm394, 1, 0
        %v411 = vsel %vm395, 1, 0
        %v412 = vsel %vm396, 1, 0
        %v413 = vsel %vm397, 1, 0
        %v414 = vsel %vm398, 1, 0
        %v415 = vsel %vm399, 1, 0
        %v416 = vsel %vm400, 1, 0
        %v417 = vsel %vm401, 1, 0
        %v418 = vsel %vm402, 1, 0
        %v419 = vsel %vm403, 1, 0
        %v420 = vcvt.s32.f32 %v404
        %v421 = vcvt.s32.f32 %v405
        %v422 = vcvt.s32.f32 %v406
        %v423 = vcvt.s32.f32 %v407
        %v424 = vcvt.s32.f32 %v408
        %v425 = vcvt.s32.f32 %v409
        %v426 = vcvt.s32.f32 %v410
        %v427 = vcvt.s32.f32 %v411
        %v428 = vcvt.s32.f32 %v412
        %v429 = vcvt.s32.f32 %v413
        %v430 = vcvt.s32.f32 %v414
        %v431 = vcvt.s32.f32 %v415
        %v432 = vcvt.s32.f32 %v416
        %v433 = vcvt.s32.f32 %v417
        %v434 = vcvt.s32.f32 %v418
        %v435 = vcvt.s32.f32 %v419
        %v436 = vpack.c.bf16 %v421, %v420
        %v437 = vpack.c.bf16 %v423, %v422
        %v438 = vpack.c.bf16 %v425, %v424
        %v439 = vpack.c.bf16 %v427, %v426
        %v440 = vpack.c.bf16 %v429, %v428
        %v441 = vpack.c.bf16 %v431, %v430
        %v442 = vpack.c.bf16 %v433, %v432
        %v443 = vpack.c.bf16 %v435, %v434
        %v444 = vld [vmem:[%s1] sm:$0xf]
        %v445 = vld [vmem:[%s1 + $0x4] sm:$0xf]
        %v446 = vld [vmem:[%s1 + $0x8] sm:$0xf]
        %v447 = vld [vmem:[%s1 + $0xc] sm:$0xf]
        %v448 = vld [vmem:[%s1 + $0x10] sm:$0xf]
        %v449 = vld [vmem:[%s1 + $0x14] sm:$0xf]
        %v450 = vld [vmem:[%s1 + $0x18] sm:$0xf]
        %v451 = vld [vmem:[%s1 + $0x1c] sm:$0xf]
        %v452 = vld [vmem:[%s1 + $0x20] sm:$0xf]
        %v453 = vld [vmem:[%s1 + $0x24] sm:$0xf]
        %v454 = vld [vmem:[%s1 + $0x28] sm:$0xf]
        %v455 = vld [vmem:[%s1 + $0x2c] sm:$0xf]
        %v456 = vld [vmem:[%s1 + $0x30] sm:$0xf]
        %v457 = vld [vmem:[%s1 + $0x34] sm:$0xf]
        %v458 = vld [vmem:[%s1 + $0x38] sm:$0xf]
        %v459 = vld [vmem:[%s1 + $0x3c] sm:$0xf]
        %v476 = vunpack.c.l.b16 %v444
        %v477 = vunpack.c.l.b16 %v445
        %v478 = vunpack.c.l.b16 %v446
        %v479 = vunpack.c.l.b16 %v447
        %v480 = vunpack.c.l.b16 %v448
        %v481 = vunpack.c.l.b16 %v449
        %v482 = vunpack.c.l.b16 %v450
        %v483 = vunpack.c.l.b16 %v451
        %v484 = vunpack.c.l.b16 %v452
        %v485 = vunpack.c.l.b16 %v453
        %v486 = vunpack.c.l.b16 %v454
        %v487 = vunpack.c.l.b16 %v455
        %v488 = vunpack.c.l.b16 %v456
        %v489 = vunpack.c.l.b16 %v457
        %v490 = vunpack.c.l.b16 %v458
        %v491 = vunpack.c.l.b16 %v459
        %v492 = vpack.c.b16 %v477, %v476
        %v493 = vpack.c.b16 %v479, %v478
        %v494 = vpack.c.b16 %v481, %v480
        %v495 = vpack.c.b16 %v483, %v482
        %v496 = vpack.c.b16 %v485, %v484
        %v497 = vpack.c.b16 %v487, %v486
        %v498 = vpack.c.b16 %v489, %v488
        %v499 = vpack.c.b16 %v491, %v490
        %508 = vmatprep.subr.bf16.mxu0 0
        %509 = vmatpush1.bf16.msra.mxu0 %v492
        %510 = vmatprep.subr.bf16.mxu0 0
        %511 = vmatpush1.bf16.msra.mxu0 %v493
        %512 = vmatprep.subr.bf16.mxu0 0
        %513 = vmatpush1.bf16.msra.mxu0 %v494
        %514 = vmatprep.subr.bf16.mxu0 0
        %515 = vmatpush1.bf16.msra.mxu0 %v495
        %516 = vmatprep.subr.bf16.mxu0 0
        %517 = vmatpush1.bf16.msra.mxu0 %v496
        %518 = vmatprep.subr.bf16.mxu0 0
        %519 = vmatpush1.bf16.msra.mxu0 %v497
        %520 = vmatprep.subr.bf16.mxu0 0
        %521 = vmatpush1.bf16.msra.mxu0 %v498
        %522 = vmatprep.subr.bf16.mxu0 0
        %523 = vmatpush1.bf16.msra.mxu0 %v499
        %524 = vmatprep.subr.bf16.mxu0 0
        %525 = vmatpush1.bf16.msra.mxu0 0
        %526 = vmatprep.subr.bf16.mxu0 0
        %527 = vmatpush1.bf16.msra.mxu0 0
        %528 = vmatprep.subr.bf16.mxu0 0
        %529 = vmatpush1.bf16.msra.mxu0 0
        %530 = vmatprep.subr.bf16.mxu0 0
        %531 = vmatpush1.bf16.msra.mxu0 0
        %532 = vmatprep.subr.bf16.mxu0 0
        %533 = vmatpush1.bf16.msra.mxu0 0
        %534 = vmatprep.subr.bf16.mxu0 0
        %535 = vmatpush1.bf16.msra.mxu0 0
        %536 = vmatprep.subr.bf16.mxu0 0
        %537 = vmatpush1.bf16.msra.mxu0 0
        %538 = vmatprep.subr.bf16.mxu0 0
        %539 = vmatpush1.bf16.msra.mxu0 0
        %540 = vmatprep.mubr.bf16.mxu0 0
        %541 = vmatmul.mubr.bf16.gmra.mrb[0].mxu0 %v436
        %v542 = vpop.f32.mrb[0].mxu0
        %v543 = vadd.f32 0.0, %v542
        %v544 = vpop.f32.mrb[0].mxu0
        %v545 = vpop.f32.mrb[0].mxu0
        %v546 = vadd.f32 0.0, %v545
        %v547 = vpop.f32.mrb[0].mxu0
        %548 = vmatprep.mubr.bf16.mxu0 0
        %549 = vmatmul.mubr.bf16.gmra.mrb[0].mxu0 %v437
        %v550 = vpop.f32.mrb[0].mxu0
        %v551 = vadd.f32 0.0, %v550
        %v552 = vpop.f32.mrb[0].mxu0
        %v553 = vpop.f32.mrb[0].mxu0
        %v554 = vadd.f32 0.0, %v553
        %v555 = vpop.f32.mrb[0].mxu0
        %556 = vmatprep.mubr.bf16.mxu0 0
        %557 = vmatmul.mubr.bf16.gmra.mrb[0].mxu0 %v438
        %v558 = vpop.f32.mrb[0].mxu0
        %v559 = vadd.f32 0.0, %v558
        %v560 = vpop.f32.mrb[0].mxu0
        %v561 = vpop.f32.mrb[0].mxu0
        %v562 = vadd.f32 0.0, %v561
        %v563 = vpop.f32.mrb[0].mxu0
        %564 = vmatprep.mubr.bf16.mxu0 0
        %565 = vmatmul.mubr.bf16.gmra.mrb[0].mxu0 %v439
        %v566 = vpop.f32.mrb[0].mxu0
        %v567 = vadd.f32 0.0, %v566
        %v568 = vpop.f32.mrb[0].mxu0
        %v569 = vpop.f32.mrb[0].mxu0
        %v570 = vadd.f32 0.0, %v569
        %v571 = vpop.f32.mrb[0].mxu0
        %572 = vmatprep.mubr.bf16.mxu0 0
        %573 = vmatmul.mubr.bf16.gmra.mrb[0].mxu0 %v440
        %v574 = vpop.f32.mrb[0].mxu0
        %v575 = vadd.f32 0.0, %v574
        %v576 = vpop.f32.mrb[0].mxu0
        %v577 = vpop.f32.mrb[0].mxu0
        %v578 = vadd.f32 0.0, %v577
        %v579 = vpop.f32.mrb[0].mxu0
        %580 = vmatprep.mubr.bf16.mxu0 0
        %581 = vmatmul.mubr.bf16.gmra.mrb[0].mxu0 %v441
        %v582 = vpop.f32.mrb[0].mxu0
        %v583 = vadd.f32 0.0, %v582
        %v584 = vpop.f32.mrb[0].mxu0
        %v585 = vpop.f32.mrb[0].mxu0
        %v586 = vadd.f32 0.0, %v585
        %v587 = vpop.f32.mrb[0].mxu0
        %588 = vmatprep.mubr.bf16.mxu0 0
        %589 = vmatmul.mubr.bf16.gmra.mrb[0].mxu0 %v442
        %v590 = vpop.f32.mrb[0].mxu0
        %v591 = vadd.f32 0.0, %v590
        %v592 = vpop.f32.mrb[0].mxu0
        %v593 = vpop.f32.mrb[0].mxu0
        %v594 = vadd.f32 0.0, %v593
        %v595 = vpop.f32.mrb[0].mxu0
        %596 = vmatprep.mubr.bf16.mxu0 0
        %597 = vmatmul.mubr.bf16.gmra.mrb[0].mxu0 %v443
        %v598 = vpop.f32.mrb[0].mxu0
        %v599 = vadd.f32 0.0, %v598
        %v600 = vpop.f32.mrb[0].mxu0
        %v601 = vpop.f32.mrb[0].mxu0
        %v602 = vadd.f32 0.0, %v601
        %v603 = vpop.f32.mrb[0].mxu0
        %604 = vdwg.mxu0
        %v605 = vmax.f32 %v543, 0.0
        %v606 = vmax.f32 %v546, 0.0
        %v607 = vmax.f32 %v551, 0.0
        %v608 = vmax.f32 %v554, 0.0
        %v609 = vmax.f32 %v559, 0.0
        %v610 = vmax.f32 %v562, 0.0
        %v611 = vmax.f32 %v567, 0.0
        %v612 = vmax.f32 %v570, 0.0
        %v613 = vmax.f32 %v575, 0.0
        %v614 = vmax.f32 %v578, 0.0
        %v615 = vmax.f32 %v583, 0.0
        %v616 = vmax.f32 %v586, 0.0
        %v617 = vmax.f32 %v591, 0.0
        %v618 = vmax.f32 %v594, 0.0
        %v619 = vmax.f32 %v599, 0.0
        %v620 = vmax.f32 %v602, 0.0
        %v621 = vlaneseq
        %v622 = vshrl.u32 %v621, 7
        %v623 = vadd.s32 %v622, 8
        %v624 = vadd.s32 %v622, 16
        %v625 = vadd.s32 %v622, 24
        %v626 = vadd.s32 %v622, 32
        %v627 = vadd.s32 %v622, 40
        %v628 = vadd.s32 %v622, 48
        %v629 = vadd.s32 %v622, 56
        %v630 = vadd.s32 %v622, 64
        %v631 = vadd.s32 %v622, 72
        %v632 = vadd.s32 %v622, 80
        %v633 = vadd.s32 %v622, 88
        %v634 = vadd.s32 %v622, 96
        %v635 = vadd.s32 %v622, 104
        %v636 = vadd.s32 %v622, 112
        %v637 = vadd.s32 %v622, 120
        %vm638 = vcmp.lt.s32.totalorder %v622, 0
        %v639 = vsub.s32 0, %v622
        %v640 = vsel %vm638, %v639, %v622
        %v641 = vshrl.u32 %v640, 4
        %v642 = vand.u32 %v640, 15
        %v643 = vsub.s32 0, %v642
        %v644 = vsel %vm638, %v643, %v642
        %vm645 = vcmp.lt.s32.totalorder %v623, 0
        %v646 = vsub.s32 0, %v623
        %v647 = vsel %vm645, %v646, %v623
        %v648 = vshrl.u32 %v647, 4
        %v649 = vand.u32 %v647, 15
        %v650 = vsub.s32 0, %v649
        %v651 = vsel %vm645, %v650, %v649
        %vm652 = vcmp.lt.s32.totalorder %v624, 0
        %v653 = vsub.s32 0, %v624
        %v654 = vsel %vm652, %v653, %v624
        %v655 = vshrl.u32 %v654, 4
        %v656 = vand.u32 %v654, 15
        %v657 = vsub.s32 0, %v656
        %v658 = vsel %vm652, %v657, %v656
        %vm659 = vcmp.lt.s32.totalorder %v625, 0
        %v660 = vsub.s32 0, %v625
        %v661 = vsel %vm659, %v660, %v625
        %v662 = vshrl.u32 %v661, 4
        %v663 = vand.u32 %v661, 15
        %v664 = vsub.s32 0, %v663
        %v665 = vsel %vm659, %v664, %v663
        %vm666 = vcmp.lt.s32.totalorder %v626, 0
        %v667 = vsub.s32 0, %v626
        %v668 = vsel %vm666, %v667, %v626
        %v669 = vshrl.u32 %v668, 4
        %v670 = vand.u32 %v668, 15
        %v671 = vsub.s32 0, %v670
        %v672 = vsel %vm666, %v671, %v670
        %vm673 = vcmp.lt.s32.totalorder %v627, 0
        %v674 = vsub.s32 0, %v627
        %v675 = vsel %vm673, %v674, %v627
        %v676 = vshrl.u32 %v675, 4
        %v677 = vand.u32 %v675, 15
        %v678 = vsub.s32 0, %v677
        %v679 = vsel %vm673, %v678, %v677
        %vm680 = vcmp.lt.s32.totalorder %v628, 0
        %v681 = vsub.s32 0, %v628
        %v682 = vsel %vm680, %v681, %v628
        %v683 = vshrl.u32 %v682, 4
        %v684 = vand.u32 %v682, 15
        %v685 = vsub.s32 0, %v684
        %v686 = vsel %vm680, %v685, %v684
        %vm687 = vcmp.lt.s32.totalorder %v629, 0
        %v688 = vsub.s32 0, %v629
        %v689 = vsel %vm687, %v688, %v629
        %v690 = vshrl.u32 %v689, 4
        %v691 = vand.u32 %v689, 15
        %v692 = vsub.s32 0, %v691
        %v693 = vsel %vm687, %v692, %v691
        %vm694 = vcmp.lt.s32.totalorder %v630, 0
        %v695 = vsub.s32 0, %v630
        %v696 = vsel %vm694, %v695, %v630
        %v697 = vshrl.u32 %v696, 4
        %v698 = vand.u32 %v696, 15
        %v699 = vsub.s32 0, %v698
        %v700 = vsel %vm694, %v699, %v698
        %vm701 = vcmp.lt.s32.totalorder %v631, 0
        %v702 = vsub.s32 0, %v631
        %v703 = vsel %vm701, %v702, %v631
        %v704 = vshrl.u32 %v703, 4
        %v705 = vand.u32 %v703, 15
        %v706 = vsub.s32 0, %v705
        %v707 = vsel %vm701, %v706, %v705
        %vm708 = vcmp.lt.s32.totalorder %v632, 0
        %v709 = vsub.s32 0, %v632
        %v710 = vsel %vm708, %v709, %v632
        %v711 = vshrl.u32 %v710, 4
        %v712 = vand.u32 %v710, 15
        %v713 = vsub.s32 0, %v712
        %v714 = vsel %vm708, %v713, %v712
        %vm715 = vcmp.lt.s32.totalorder %v633, 0
        %v716 = vsub.s32 0, %v633
        %v717 = vsel %vm715, %v716, %v633
        %v718 = vshrl.u32 %v717, 4
        %v719 = vand.u32 %v717, 15
        %v720 = vsub.s32 0, %v719
        %v721 = vsel %vm715, %v720, %v719
        %vm722 = vcmp.lt.s32.totalorder %v634, 0
        %v723 = vsub.s32 0, %v634
        %v724 = vsel %vm722, %v723, %v634
        %v725 = vshrl.u32 %v724, 4
        %v726 = vand.u32 %v724, 15
        %v727 = vsub.s32 0, %v726
        %v728 = vsel %vm722, %v727, %v726
        %vm729 = vcmp.lt.s32.totalorder %v635, 0
        %v730 = vsub.s32 0, %v635
        %v731 = vsel %vm729, %v730, %v635
        %v732 = vshrl.u32 %v731, 4
        %v733 = vand.u32 %v731, 15
        %v734 = vsub.s32 0, %v733
        %v735 = vsel %vm729, %v734, %v733
        %vm736 = vcmp.lt.s32.totalorder %v636, 0
        %v737 = vsub.s32 0, %v636
        %v738 = vsel %vm736, %v737, %v636
        %v739 = vshrl.u32 %v738, 4
        %v740 = vand.u32 %v738, 15
        %v741 = vsub.s32 0, %v740
        %v742 = vsel %vm736, %v741, %v740
        %vm743 = vcmp.lt.s32.totalorder %v637, 0
        %v744 = vsub.s32 0, %v637
        %v745 = vsel %vm743, %v744, %v637
        %v746 = vshrl.u32 %v745, 4
        %v747 = vand.u32 %v745, 15
        %v748 = vsub.s32 0, %v747
        %v749 = vsel %vm743, %v748, %v747
        %vm750 = vcmp.ne.s32.totalorder %v644, 0
        %vm751 = vcmp.ne.s32.totalorder %v651, 0
        %vm752 = vcmp.ne.s32.totalorder %v658, 0
        %vm753 = vcmp.ne.s32.totalorder %v665, 0
        %vm754 = vcmp.ne.s32.totalorder %v672, 0
        %vm755 = vcmp.ne.s32.totalorder %v679, 0
        %vm756 = vcmp.ne.s32.totalorder %v686, 0
        %vm757 = vcmp.ne.s32.totalorder %v693, 0
        %vm758 = vcmp.ne.s32.totalorder %v700, 0
        %vm759 = vcmp.ne.s32.totalorder %v707, 0
        %vm760 = vcmp.ne.s32.totalorder %v714, 0
        %vm761 = vcmp.ne.s32.totalorder %v721, 0
        %vm762 = vcmp.ne.s32.totalorder %v728, 0
        %vm763 = vcmp.ne.s32.totalorder %v735, 0
        %vm764 = vcmp.ne.s32.totalorder %v742, 0
        %vm765 = vcmp.ne.s32.totalorder %v749, 0
        %vm766 = vcmp.lt.s32.totalorder %v644, 0
        %vm767 = vcmp.lt.s32.totalorder %v651, 0
        %vm768 = vcmp.lt.s32.totalorder %v658, 0
        %vm769 = vcmp.lt.s32.totalorder %v665, 0
        %vm770 = vcmp.lt.s32.totalorder %v672, 0
        %vm771 = vcmp.lt.s32.totalorder %v679, 0
        %vm772 = vcmp.lt.s32.totalorder %v686, 0
        %vm773 = vcmp.lt.s32.totalorder %v693, 0
        %vm774 = vcmp.lt.s32.totalorder %v700, 0
        %vm775 = vcmp.lt.s32.totalorder %v707, 0
        %vm776 = vcmp.lt.s32.totalorder %v714, 0
        %vm777 = vcmp.lt.s32.totalorder %v721, 0
        %vm778 = vcmp.lt.s32.totalorder %v728, 0
        %vm779 = vcmp.lt.s32.totalorder %v735, 0
        %vm780 = vcmp.lt.s32.totalorder %v742, 0
        %vm781 = vcmp.lt.s32.totalorder %v749, 0
        %vm782 = vmand %vm766, %vm750
        %vm783 = vmand %vm767, %vm751
        %vm784 = vmand %vm768, %vm752
        %vm785 = vmand %vm769, %vm753
        %vm786 = vmand %vm770, %vm754
        %vm787 = vmand %vm771, %vm755
        %vm788 = vmand %vm772, %vm756
        %vm789 = vmand %vm773, %vm757
        %vm790 = vmand %vm774, %vm758
        %vm791 = vmand %vm775, %vm759
        %vm792 = vmand %vm776, %vm760
        %vm793 = vmand %vm777, %vm761
        %vm794 = vmand %vm778, %vm762
        %vm795 = vmand %vm779, %vm763
        %vm796 = vmand %vm780, %vm764
        %vm797 = vmand %vm781, %vm765
        %v798 = vadd.s32 %v644, 16
        %v799 = vadd.s32 %v651, 16
        %v800 = vadd.s32 %v658, 16
        %v801 = vadd.s32 %v665, 16
        %v802 = vadd.s32 %v672, 16
        %v803 = vadd.s32 %v679, 16
        %v804 = vadd.s32 %v686, 16
        %v805 = vadd.s32 %v693, 16
        %v806 = vadd.s32 %v700, 16
        %v807 = vadd.s32 %v707, 16
        %v808 = vadd.s32 %v714, 16
        %v809 = vadd.s32 %v721, 16
        %v810 = vadd.s32 %v728, 16
        %v811 = vadd.s32 %v735, 16
        %v812 = vadd.s32 %v742, 16
        %v813 = vadd.s32 %v749, 16
        %v814 = vsel %vm782, %v798, %v644
        %v815 = vsel %vm783, %v799, %v651
        %v816 = vsel %vm784, %v800, %v658
        %v817 = vsel %vm785, %v801, %v665
        %v818 = vsel %vm786, %v802, %v672
        %v819 = vsel %vm787, %v803, %v679
        %v820 = vsel %vm788, %v804, %v686
        %v821 = vsel %vm789, %v805, %v693
        %v822 = vsel %vm790, %v806, %v700
        %v823 = vsel %vm791, %v807, %v707
        %v824 = vsel %vm792, %v808, %v714
        %v825 = vsel %vm793, %v809, %v721
        %v826 = vsel %vm794, %v810, %v728
        %v827 = vsel %vm795, %v811, %v735
        %v828 = vsel %vm796, %v812, %v742
        %v829 = vsel %vm797, %v813, %v749
        %vm830 = vcmp.lt.s32.totalorder %v814, 4
        %vm831 = vcmp.lt.s32.totalorder %v815, 4
        %vm832 = vcmp.lt.s32.totalorder %v816, 4
        %vm833 = vcmp.lt.s32.totalorder %v817, 4
        %vm834 = vcmp.lt.s32.totalorder %v818, 4
        %vm835 = vcmp.lt.s32.totalorder %v819, 4
        %vm836 = vcmp.lt.s32.totalorder %v820, 4
        %vm837 = vcmp.lt.s32.totalorder %v821, 4
        %vm838 = vcmp.lt.s32.totalorder %v822, 4
        %vm839 = vcmp.lt.s32.totalorder %v823, 4
        %vm840 = vcmp.lt.s32.totalorder %v824, 4
        %vm841 = vcmp.lt.s32.totalorder %v825, 4
        %vm842 = vcmp.lt.s32.totalorder %v826, 4
        %vm843 = vcmp.lt.s32.totalorder %v827, 4
        %vm844 = vcmp.lt.s32.totalorder %v828, 4
        %vm845 = vcmp.lt.s32.totalorder %v829, 4
        %v846 = vrot.slane %v605, 4
        %v847 = vrot.slane %v606, 4
        %v848 = vrot.slane %v607, 4
        %v849 = vrot.slane %v608, 4
        %v850 = vrot.slane %v609, 4
        %v851 = vrot.slane %v610, 4
        %v852 = vrot.slane %v611, 4
        %v853 = vrot.slane %v612, 4
        %v854 = vrot.slane %v613, 4
        %v855 = vrot.slane %v614, 4
        %v856 = vrot.slane %v615, 4
        %v857 = vrot.slane %v616, 4
        %v858 = vrot.slane %v617, 4
        %v859 = vrot.slane %v618, 4
        %v860 = vrot.slane %v619, 4
        %v861 = vrot.slane %v620, 4
        %vm862 = vcmp.lt.s32.totalorder %v622, 4
        %v863 = vsel %vm862, %v860, %v861
        %v864 = vsel %vm862, %v859, %v860
        %v865 = vsel %vm862, %v858, %v859
        %v866 = vsel %vm862, %v857, %v858
        %v867 = vsel %vm862, %v856, %v857
        %v868 = vsel %vm862, %v855, %v856
        %v869 = vsel %vm862, %v854, %v855
        %v870 = vsel %vm862, %v853, %v854
        %v871 = vsel %vm862, %v852, %v853
        %v872 = vsel %vm862, %v851, %v852
        %v873 = vsel %vm862, %v850, %v851
        %v874 = vsel %vm862, %v849, %v850
        %v875 = vsel %vm862, %v848, %v849
        %v876 = vsel %vm862, %v847, %v848
        %v877 = vsel %vm862, %v846, %v847
        %v878 = vsel %vm862, %v861, %v846
        %v879 = vsel %vm830, 1, 0
        %v880 = vsel %vm831, 1, 0
        %v881 = vsel %vm832, 1, 0
        %v882 = vsel %vm833, 1, 0
        %v883 = vsel %vm834, 1, 0
        %v884 = vsel %vm835, 1, 0
        %v885 = vsel %vm836, 1, 0
        %v886 = vsel %vm837, 1, 0
        %v887 = vsel %vm838, 1, 0
        %v888 = vsel %vm839, 1, 0
        %v889 = vsel %vm840, 1, 0
        %v890 = vsel %vm841, 1, 0
        %v891 = vsel %vm842, 1, 0
        %v892 = vsel %vm843, 1, 0
        %v893 = vsel %vm844, 1, 0
        %v894 = vsel %vm845, 1, 0
        %vm895 = vcmp.eq.s32.totalorder %v879, 1
        %vm896 = vcmp.eq.s32.totalorder %v880, 1
        %vm897 = vcmp.eq.s32.totalorder %v881, 1
        %vm898 = vcmp.eq.s32.totalorder %v882, 1
        %vm899 = vcmp.eq.s32.totalorder %v883, 1
        %vm900 = vcmp.eq.s32.totalorder %v884, 1
        %vm901 = vcmp.eq.s32.totalorder %v885, 1
        %vm902 = vcmp.eq.s32.totalorder %v886, 1
        %vm903 = vcmp.eq.s32.totalorder %v887, 1
        %vm904 = vcmp.eq.s32.totalorder %v888, 1
        %vm905 = vcmp.eq.s32.totalorder %v889, 1
        %vm906 = vcmp.eq.s32.totalorder %v890, 1
        %vm907 = vcmp.eq.s32.totalorder %v891, 1
        %vm908 = vcmp.eq.s32.totalorder %v892, 1
        %vm909 = vcmp.eq.s32.totalorder %v893, 1
        %vm910 = vcmp.eq.s32.totalorder %v894, 1
        %v911 = vsel %vm895, 0.0, %v878
        %v912 = vsel %vm896, 0.0, %v877
        %v913 = vsel %vm897, 0.0, %v876
        %v914 = vsel %vm898, 0.0, %v875
        %v915 = vsel %vm899, 0.0, %v874
        %v916 = vsel %vm900, 0.0, %v873
        %v917 = vsel %vm901, 0.0, %v872
        %v918 = vsel %vm902, 0.0, %v871
        %v919 = vsel %vm903, 0.0, %v870
        %v920 = vsel %vm904, 0.0, %v869
        %v921 = vsel %vm905, 0.0, %v868
        %v922 = vsel %vm906, 0.0, %v867
        %v923 = vsel %vm907, 0.0, %v866
        %v924 = vsel %vm908, 0.0, %v865
        %v925 = vsel %vm909, 0.0, %v864
        %v926 = vsel %vm910, 0.0, %v863
        %v927 = vpack.c.bf16 %v912, %v911
        %v928 = vpack.c.bf16 %v914, %v913
        %v929 = vpack.c.bf16 %v916, %v915
        %v930 = vpack.c.bf16 %v918, %v917
        %v931 = vpack.c.bf16 %v920, %v919
        %v932 = vpack.c.bf16 %v922, %v921
        %v933 = vpack.c.bf16 %v924, %v923
        %v934 = vpack.c.bf16 %v926, %v925
        %v935 = vld [vmem:[#allocation2] sm:$0xf]
        %v936 = vld [vmem:[#allocation2 + $0x4] sm:$0xf]
        %v937 = vld [vmem:[#allocation2 + $0x8] sm:$0xf]
        %v938 = vld [vmem:[#allocation2 + $0xc] sm:$0xf]
        %v939 = vld [vmem:[#allocation2 + $0x10] sm:$0xf]
        %v940 = vld [vmem:[#allocation2 + $0x14] sm:$0xf]
        %v941 = vld [vmem:[#allocation2 + $0x18] sm:$0xf]
        %v942 = vld [vmem:[#allocation2 + $0x1c] sm:$0xf]
        %v943 = vld [vmem:[#allocation2 + $0x20] sm:$0xf]
        %v944 = vld [vmem:[#allocation2 + $0x24] sm:$0xf]
        %v945 = vld [vmem:[#allocation2 + $0x28] sm:$0xf]
        %v946 = vld [vmem:[#allocation2 + $0x2c] sm:$0xf]
        %v947 = vld [vmem:[#allocation2 + $0x30] sm:$0xf]
        %v948 = vld [vmem:[#allocation2 + $0x34] sm:$0xf]
        %v949 = vld [vmem:[#allocation2 + $0x38] sm:$0xf]
        %v950 = vld [vmem:[#allocation2 + $0x3c] sm:$0xf]
        %vm951 = vcmp.lt.s32.totalorder %v814, 3
        %vm952 = vcmp.lt.s32.totalorder %v815, 3
        %vm953 = vcmp.lt.s32.totalorder %v816, 3
        %vm954 = vcmp.lt.s32.totalorder %v817, 3
        %vm955 = vcmp.lt.s32.totalorder %v818, 3
        %vm956 = vcmp.lt.s32.totalorder %v819, 3
        %vm957 = vcmp.lt.s32.totalorder %v820, 3
        %vm958 = vcmp.lt.s32.totalorder %v821, 3
        %vm959 = vcmp.lt.s32.totalorder %v822, 3
        %vm960 = vcmp.lt.s32.totalorder %v823, 3
        %vm961 = vcmp.lt.s32.totalorder %v824, 3
        %vm962 = vcmp.lt.s32.totalorder %v825, 3
        %vm963 = vcmp.lt.s32.totalorder %v826, 3
        %vm964 = vcmp.lt.s32.totalorder %v827, 3
        %vm965 = vcmp.lt.s32.totalorder %v828, 3
        %vm966 = vcmp.lt.s32.totalorder %v829, 3
        %v967 = vrot.slane %v605, 5
        %v968 = vrot.slane %v606, 5
        %v969 = vrot.slane %v607, 5
        %v970 = vrot.slane %v608, 5
        %v971 = vrot.slane %v609, 5
        %v972 = vrot.slane %v610, 5
        %v973 = vrot.slane %v611, 5
        %v974 = vrot.slane %v612, 5
        %v975 = vrot.slane %v613, 5
        %v976 = vrot.slane %v614, 5
        %v977 = vrot.slane %v615, 5
        %v978 = vrot.slane %v616, 5
        %v979 = vrot.slane %v617, 5
        %v980 = vrot.slane %v618, 5
        %v981 = vrot.slane %v619, 5
        %v982 = vrot.slane %v620, 5
        %vm983 = vcmp.lt.s32.totalorder %v622, 3
        %v984 = vsel %vm983, %v981, %v982
        %v985 = vsel %vm983, %v980, %v981
        %v986 = vsel %vm983, %v979, %v980
        %v987 = vsel %vm983, %v978, %v979
        %v988 = vsel %vm983, %v977, %v978
        %v989 = vsel %vm983, %v976, %v977
        %v990 = vsel %vm983, %v975, %v976
        %v991 = vsel %vm983, %v974, %v975
        %v992 = vsel %vm983, %v973, %v974
        %v993 = vsel %vm983, %v972, %v973
        %v994 = vsel %vm983, %v971, %v972
        %v995 = vsel %vm983, %v970, %v971
        %v996 = vsel %vm983, %v969, %v970
        %v997 = vsel %vm983, %v968, %v969
        %v998 = vsel %vm983, %v967, %v968
        %v999 = vsel %vm983, %v982, %v967
        %v1000 = vsel %vm951, 1, 0
        %v1001 = vsel %vm952, 1, 0
        %v1002 = vsel %vm953, 1, 0
        %v1003 = vsel %vm954, 1, 0
        %v1004 = vsel %vm955, 1, 0
        %v1005 = vsel %vm956, 1, 0
        %v1006 = vsel %vm957, 1, 0
        %v1007 = vsel %vm958, 1, 0
        %v1008 = vsel %vm959, 1, 0
        %v1009 = vsel %vm960, 1, 0
        %v1010 = vsel %vm961, 1, 0
        %v1011 = vsel %vm962, 1, 0
        %v1012 = vsel %vm963, 1, 0
        %v1013 = vsel %vm964, 1, 0
        %v1014 = vsel %vm965, 1, 0
        %v1015 = vsel %vm966, 1, 0
        %vm1016 = vcmp.eq.s32.totalorder %v1000, 1
        %vm1017 = vcmp.eq.s32.totalorder %v1001, 1
        %vm1018 = vcmp.eq.s32.totalorder %v1002, 1
        %vm1019 = vcmp.eq.s32.totalorder %v1003, 1
        %vm1020 = vcmp.eq.s32.totalorder %v1004, 1
        %vm1021 = vcmp.eq.s32.totalorder %v1005, 1
        %vm1022 = vcmp.eq.s32.totalorder %v1006, 1
        %vm1023 = vcmp.eq.s32.totalorder %v1007, 1
        %vm1024 = vcmp.eq.s32.totalorder %v1008, 1
        %vm1025 = vcmp.eq.s32.totalorder %v1009, 1
        %vm1026 = vcmp.eq.s32.totalorder %v1010, 1
        %vm1027 = vcmp.eq.s32.totalorder %v1011, 1
        %vm1028 = vcmp.eq.s32.totalorder %v1012, 1
        %vm1029 = vcmp.eq.s32.totalorder %v1013, 1
        %vm1030 = vcmp.eq.s32.totalorder %v1014, 1
        %vm1031 = vcmp.eq.s32.totalorder %v1015, 1
        %v1032 = vsel %vm1016, 0.0, %v999
        %v1033 = vsel %vm1017, 0.0, %v998
        %v1034 = vsel %vm1018, 0.0, %v997
        %v1035 = vsel %vm1019, 0.0, %v996
        %v1036 = vsel %vm1020, 0.0, %v995
        %v1037 = vsel %vm1021, 0.0, %v994
        %v1038 = vsel %vm1022, 0.0, %v993
        %v1039 = vsel %vm1023, 0.0, %v992
        %v1040 = vsel %vm1024, 0.0, %v991
        %v1041 = vsel %vm1025, 0.0, %v990
        %v1042 = vsel %vm1026, 0.0, %v989
        %v1043 = vsel %vm1027, 0.0, %v988
        %v1044 = vsel %vm1028, 0.0, %v987
        %v1045 = vsel %vm1029, 0.0, %v986
        %v1046 = vsel %vm1030, 0.0, %v985
        %v1047 = vsel %vm1031, 0.0, %v984
        %v1048 = vpack.c.bf16 %v1033, %v1032
        %v1049 = vpack.c.bf16 %v1035, %v1034
        %v1050 = vpack.c.bf16 %v1037, %v1036
        %v1051 = vpack.c.bf16 %v1039, %v1038
        %v1052 = vpack.c.bf16 %v1041, %v1040
        %v1053 = vpack.c.bf16 %v1043, %v1042
        %v1054 = vpack.c.bf16 %v1045, %v1044
        %v1055 = vpack.c.bf16 %v1047, %v1046
        %s1056 = scalar_lea.vmem [#allocation2], 64
        %v1057 = vld [vmem:[%s1056] sm:$0xf]
        %v1058 = vld [vmem:[%s1056 + $0x4] sm:$0xf]
        %v1059 = vld [vmem:[%s1056 + $0x8] sm:$0xf]
        %v1060 = vld [vmem:[%s1056 + $0xc] sm:$0xf]
        %v1061 = vld [vmem:[%s1056 + $0x10] sm:$0xf]
        %v1062 = vld [vmem:[%s1056 + $0x14] sm:$0xf]
        %v1063 = vld [vmem:[%s1056 + $0x18] sm:$0xf]
        %v1064 = vld [vmem:[%s1056 + $0x1c] sm:$0xf]
        %v1065 = vld [vmem:[%s1056 + $0x20] sm:$0xf]
        %v1066 = vld [vmem:[%s1056 + $0x24] sm:$0xf]
        %v1067 = vld [vmem:[%s1056 + $0x28] sm:$0xf]
        %v1068 = vld [vmem:[%s1056 + $0x2c] sm:$0xf]
        %v1069 = vld [vmem:[%s1056 + $0x30] sm:$0xf]
        %v1070 = vld [vmem:[%s1056 + $0x34] sm:$0xf]
        %v1071 = vld [vmem:[%s1056 + $0x38] sm:$0xf]
        %v1072 = vld [vmem:[%s1056 + $0x3c] sm:$0xf]
        %v1089 = vunpack.c.l.b16 %v1057
        %v1090 = vunpack.c.l.b16 %v1058
        %v1091 = vunpack.c.l.b16 %v1059
        %v1092 = vunpack.c.l.b16 %v1060
        %v1093 = vunpack.c.l.b16 %v1061
        %v1094 = vunpack.c.l.b16 %v1062
        %v1095 = vunpack.c.l.b16 %v1063
        %v1096 = vunpack.c.l.b16 %v1064
        %v1097 = vunpack.c.l.b16 %v1065
        %v1098 = vunpack.c.l.b16 %v1066
        %v1099 = vunpack.c.l.b16 %v1067
        %v1100 = vunpack.c.l.b16 %v1068
        %v1101 = vunpack.c.l.b16 %v1069
        %v1102 = vunpack.c.l.b16 %v1070
        %v1103 = vunpack.c.l.b16 %v1071
        %v1104 = vunpack.c.l.b16 %v1072
        %v1105 = vpack.c.b16 %v1090, %v1089
        %v1106 = vpack.c.b16 %v1092, %v1091
        %v1107 = vpack.c.b16 %v1094, %v1093
        %v1108 = vpack.c.b16 %v1096, %v1095
        %v1109 = vpack.c.b16 %v1098, %v1097
        %v1110 = vpack.c.b16 %v1100, %v1099
        %v1111 = vpack.c.b16 %v1102, %v1101
        %v1112 = vpack.c.b16 %v1104, %v1103
        %1121 = vmatprep.subr.bf16.mxu0 0
        %1122 = vmatpush1.bf16.msra.mxu0 %v1105
        %1123 = vmatprep.subr.bf16.mxu0 0
        %1124 = vmatpush1.bf16.msra.mxu0 %v1106
        %1125 = vmatprep.subr.bf16.mxu0 0
        %1126 = vmatpush1.bf16.msra.mxu0 %v1107
        %1127 = vmatprep.subr.bf16.mxu0 0
        %1128 = vmatpush1.bf16.msra.mxu0 %v1108
        %1129 = vmatprep.subr.bf16.mxu0 0
        %1130 = vmatpush1.bf16.msra.mxu0 %v1109
        %1131 = vmatprep.subr.bf16.mxu0 0
        %1132 = vmatpush1.bf16.msra.mxu0 %v1110
        %1133 = vmatprep.subr.bf16.mxu0 0
        %1134 = vmatpush1.bf16.msra.mxu0 %v1111
        %1135 = vmatprep.subr.bf16.mxu0 0
        %1136 = vmatpush1.bf16.msra.mxu0 %v1112
        %1137 = vmatprep.subr.bf16.mxu0 0
        %1138 = vmatpush1.bf16.msra.mxu0 0
        %1139 = vmatprep.subr.bf16.mxu0 0
        %1140 = vmatpush1.bf16.msra.mxu0 0
        %1141 = vmatprep.subr.bf16.mxu0 0
        %1142 = vmatpush1.bf16.msra.mxu0 0
        %1143 = vmatprep.subr.bf16.mxu0 0
        %1144 = vmatpush1.bf16.msra.mxu0 0
        %1145 = vmatprep.subr.bf16.mxu0 0
        %1146 = vmatpush1.bf16.msra.mxu0 0
        %1147 = vmatprep.subr.bf16.mxu0 0
        %1148 = vmatpush1.bf16.msra.mxu0 0
        %1149 = vmatprep.subr.bf16.mxu0 0
        %1150 = vmatpush1.bf16.msra.mxu0 0
        %1151 = vmatprep.subr.bf16.mxu0 0
        %1152 = vmatpush1.bf16.msra.mxu0 0
        %1153 = vmatprep.mubr.bf16.mxu0 0
        %1154 = vmatmul.mubr.bf16.gmra.mrb[0].mxu0 %v1048
        %v1155 = vpop.f32.mrb[0].mxu0
        %v1156 = vadd.f32 0.0, %v1155
        %v1157 = vpop.f32.mrb[0].mxu0
        %v1158 = vpop.f32.mrb[0].mxu0
        %v1159 = vadd.f32 0.0, %v1158
        %v1160 = vpop.f32.mrb[0].mxu0
        %1161 = vmatprep.mubr.bf16.mxu0 0
        %1162 = vmatmul.mubr.bf16.gmra.mrb[0].mxu0 %v1049
        %v1163 = vpop.f32.mrb[0].mxu0
        %v1164 = vadd.f32 0.0, %v1163
        %v1165 = vpop.f32.mrb[0].mxu0
        %v1166 = vpop.f32.mrb[0].mxu0
        %v1167 = vadd.f32 0.0, %v1166
        %v1168 = vpop.f32.mrb[0].mxu0
        %1169 = vmatprep.mubr.bf16.mxu0 0
        %1170 = vmatmul.mubr.bf16.gmra.mrb[0].mxu0 %v1050
        %v1171 = vpop.f32.mrb[0].mxu0
        %v1172 = vadd.f32 0.0, %v1171
        %v1173 = vpop.f32.mrb[0].mxu0
        %v1174 = vpop.f32.mrb[0].mxu0
        %v1175 = vadd.f32 0.0, %v1174
        %v1176 = vpop.f32.mrb[0].mxu0
        %1177 = vmatprep.mubr.bf16.mxu0 0
        %1178 = vmatmul.mubr.bf16.gmra.mrb[0].mxu0 %v1051
        %v1179 = vpop.f32.mrb[0].mxu0
        %v1180 = vadd.f32 0.0, %v1179
        %v1181 = vpop.f32.mrb[0].mxu0
        %v1182 = vpop.f32.mrb[0].mxu0
        %v1183 = vadd.f32 0.0, %v1182
        %v1184 = vpop.f32.mrb[0].mxu0
        %1185 = vmatprep.mubr.bf16.mxu0 0
        %1186 = vmatmul.mubr.bf16.gmra.mrb[0].mxu0 %v1052
        %v1187 = vpop.f32.mrb[0].mxu0
        %v1188 = vadd.f32 0.0, %v1187
        %v1189 = vpop.f32.mrb[0].mxu0
        %v1190 = vpop.f32.mrb[0].mxu0
        %v1191 = vadd.f32 0.0, %v1190
        %v1192 = vpop.f32.mrb[0].mxu0
        %1193 = vmatprep.mubr.bf16.mxu0 0
        %1194 = vmatmul.mubr.bf16.gmra.mrb[0].mxu0 %v1053
        %v1195 = vpop.f32.mrb[0].mxu0
        %v1196 = vadd.f32 0.0, %v1195
        %v1197 = vpop.f32.mrb[0].mxu0
        %v1198 = vpop.f32.mrb[0].mxu0
        %v1199 = vadd.f32 0.0, %v1198
        %v1200 = vpop.f32.mrb[0].mxu0
        %1201 = vmatprep.mubr.bf16.mxu0 0
        %1202 = vmatmul.mubr.bf16.gmra.mrb[0].mxu0 %v1054
        %v1203 = vpop.f32.mrb[0].mxu0
        %v1204 = vadd.f32 0.0, %v1203
        %v1205 = vpop.f32.mrb[0].mxu0
        %v1206 = vpop.f32.mrb[0].mxu0
        %v1207 = vadd.f32 0.0, %v1206
        %v1208 = vpop.f32.mrb[0].mxu0
        %1209 = vmatprep.mubr.bf16.mxu0 0
        %1210 = vmatmul.mubr.bf16.gmra.mrb[0].mxu0 %v1055
        %v1211 = vpop.f32.mrb[0].mxu0
        %v1212 = vadd.f32 0.0, %v1211
        %v1213 = vpop.f32.mrb[0].mxu0
        %v1214 = vpop.f32.mrb[0].mxu0
        %v1215 = vadd.f32 0.0, %v1214
        %v1216 = vpop.f32.mrb[0].mxu0
        %1217 = vdwg.mxu0
        %v1234 = vunpack.c.l.b16 %v935
        %v1235 = vunpack.c.l.b16 %v936
        %v1236 = vunpack.c.l.b16 %v937
        %v1237 = vunpack.c.l.b16 %v938
        %v1238 = vunpack.c.l.b16 %v939
        %v1239 = vunpack.c.l.b16 %v940
        %v1240 = vunpack.c.l.b16 %v941
        %v1241 = vunpack.c.l.b16 %v942
        %v1242 = vunpack.c.l.b16 %v943
        %v1243 = vunpack.c.l.b16 %v944
        %v1244 = vunpack.c.l.b16 %v945
        %v1245 = vunpack.c.l.b16 %v946
        %v1246 = vunpack.c.l.b16 %v947
        %v1247 = vunpack.c.l.b16 %v948
        %v1248 = vunpack.c.l.b16 %v949
        %v1249 = vunpack.c.l.b16 %v950
        %v1250 = vpack.c.b16 %v1235, %v1234
        %v1251 = vpack.c.b16 %v1237, %v1236
        %v1252 = vpack.c.b16 %v1239, %v1238
        %v1253 = vpack.c.b16 %v1241, %v1240
        %v1254 = vpack.c.b16 %v1243, %v1242
        %v1255 = vpack.c.b16 %v1245, %v1244
        %v1256 = vpack.c.b16 %v1247, %v1246
        %v1257 = vpack.c.b16 %v1249, %v1248
        %1266 = vmatprep.subr.bf16.mxu0 0
        %1267 = vmatpush1.bf16.msra.mxu0 %v1250
        %1268 = vmatprep.subr.bf16.mxu0 0
        %1269 = vmatpush1.bf16.msra.mxu0 %v1251
        %1270 = vmatprep.subr.bf16.mxu0 0
        %1271 = vmatpush1.bf16.msra.mxu0 %v1252
        %1272 = vmatprep.subr.bf16.mxu0 0
        %1273 = vmatpush1.bf16.msra.mxu0 %v1253
        %1274 = vmatprep.subr.bf16.mxu0 0
        %1275 = vmatpush1.bf16.msra.mxu0 %v1254
        %1276 = vmatprep.subr.bf16.mxu0 0
        %1277 = vmatpush1.bf16.msra.mxu0 %v1255
        %1278 = vmatprep.subr.bf16.mxu0 0
        %1279 = vmatpush1.bf16.msra.mxu0 %v1256
        %1280 = vmatprep.subr.bf16.mxu0 0
        %1281 = vmatpush1.bf16.msra.mxu0 %v1257
        %1282 = vmatprep.subr.bf16.mxu0 0
        %1283 = vmatpush1.bf16.msra.mxu0 0
        %1284 = vmatprep.subr.bf16.mxu0 0
        %1285 = vmatpush1.bf16.msra.mxu0 0
        %1286 = vmatprep.subr.bf16.mxu0 0
        %1287 = vmatpush1.bf16.msra.mxu0 0
        %1288 = vmatprep.subr.bf16.mxu0 0
        %1289 = vmatpush1.bf16.msra.mxu0 0
        %1290 = vmatprep.subr.bf16.mxu0 0
        %1291 = vmatpush1.bf16.msra.mxu0 0
        %1292 = vmatprep.subr.bf16.mxu0 0
        %1293 = vmatpush1.bf16.msra.mxu0 0
        %1294 = vmatprep.subr.bf16.mxu0 0
        %1295 = vmatpush1.bf16.msra.mxu0 0
        %1296 = vmatprep.subr.bf16.mxu0 0
        %1297 = vmatpush1.bf16.msra.mxu0 0
        %1298 = vmatprep.mubr.bf16.mxu0 0
        %1299 = vmatmul.mubr.bf16.gmra.mrb[0].mxu0 %v927
        %v1300 = vpop.f32.mrb[0].mxu0
        %v1301 = vadd.f32 %v1156, %v1300
        %v1302 = vpop.f32.mrb[0].mxu0
        %v1303 = vpop.f32.mrb[0].mxu0
        %v1304 = vadd.f32 %v1159, %v1303
        %v1305 = vpop.f32.mrb[0].mxu0
        %1306 = vmatprep.mubr.bf16.mxu0 0
        %1307 = vmatmul.mubr.bf16.gmra.mrb[0].mxu0 %v928
        %v1308 = vpop.f32.mrb[0].mxu0
        %v1309 = vadd.f32 %v1164, %v1308
        %v1310 = vpop.f32.mrb[0].mxu0
        %v1311 = vpop.f32.mrb[0].mxu0
        %v1312 = vadd.f32 %v1167, %v1311
        %v1313 = vpop.f32.mrb[0].mxu0
        %1314 = vmatprep.mubr.bf16.mxu0 0
        %1315 = vmatmul.mubr.bf16.gmra.mrb[0].mxu0 %v929
        %v1316 = vpop.f32.mrb[0].mxu0
        %v1317 = vadd.f32 %v1172, %v1316
        %v1318 = vpop.f32.mrb[0].mxu0
        %v1319 = vpop.f32.mrb[0].mxu0
        %v1320 = vadd.f32 %v1175, %v1319
        %v1321 = vpop.f32.mrb[0].mxu0
        %1322 = vmatprep.mubr.bf16.mxu0 0
        %1323 = vmatmul.mubr.bf16.gmra.mrb[0].mxu0 %v930
        %v1324 = vpop.f32.mrb[0].mxu0
        %v1325 = vadd.f32 %v1180, %v1324
        %v1326 = vpop.f32.mrb[0].mxu0
        %v1327 = vpop.f32.mrb[0].mxu0
        %v1328 = vadd.f32 %v1183, %v1327
        %v1329 = vpop.f32.mrb[0].mxu0
        %1330 = vmatprep.mubr.bf16.mxu0 0
        %1331 = vmatmul.mubr.bf16.gmra.mrb[0].mxu0 %v931
        %v1332 = vpop.f32.mrb[0].mxu0
        %v1333 = vadd.f32 %v1188, %v1332
        %v1334 = vpop.f32.mrb[0].mxu0
        %v1335 = vpop.f32.mrb[0].mxu0
        %v1336 = vadd.f32 %v1191, %v1335
        %v1337 = vpop.f32.mrb[0].mxu0
        %1338 = vmatprep.mubr.bf16.mxu0 0
        %1339 = vmatmul.mubr.bf16.gmra.mrb[0].mxu0 %v932
        %v1340 = vpop.f32.mrb[0].mxu0
        %v1341 = vadd.f32 %v1196, %v1340
        %v1342 = vpop.f32.mrb[0].mxu0
        %v1343 = vpop.f32.mrb[0].mxu0
        %v1344 = vadd.f32 %v1199, %v1343
        %v1345 = vpop.f32.mrb[0].mxu0
        %1346 = vmatprep.mubr.bf16.mxu0 0
        %1347 = vmatmul.mubr.bf16.gmra.mrb[0].mxu0 %v933
        %v1348 = vpop.f32.mrb[0].mxu0
        %v1349 = vadd.f32 %v1204, %v1348
        %v1350 = vpop.f32.mrb[0].mxu0
        %v1351 = vpop.f32.mrb[0].mxu0
        %v1352 = vadd.f32 %v1207, %v1351
        %v1353 = vpop.f32.mrb[0].mxu0
        %1354 = vmatprep.mubr.bf16.mxu0 0
        %1355 = vmatmul.mubr.bf16.gmra.mrb[0].mxu0 %v934
        %v1356 = vpop.f32.mrb[0].mxu0
        %v1357 = vadd.f32 %v1212, %v1356
        %v1358 = vpop.f32.mrb[0].mxu0
        %v1359 = vpop.f32.mrb[0].mxu0
        %v1360 = vadd.f32 %v1215, %v1359
        %v1361 = vpop.f32.mrb[0].mxu0
        %1362 = vdwg.mxu0
        %vm1363 = vcmp.lt.s32.totalorder %v814, 2
        %vm1364 = vcmp.lt.s32.totalorder %v815, 2
        %vm1365 = vcmp.lt.s32.totalorder %v816, 2
        %vm1366 = vcmp.lt.s32.totalorder %v817, 2
        %vm1367 = vcmp.lt.s32.totalorder %v818, 2
        %vm1368 = vcmp.lt.s32.totalorder %v819, 2
        %vm1369 = vcmp.lt.s32.totalorder %v820, 2
        %vm1370 = vcmp.lt.s32.totalorder %v821, 2
        %vm1371 = vcmp.lt.s32.totalorder %v822, 2
        %vm1372 = vcmp.lt.s32.totalorder %v823, 2
        %vm1373 = vcmp.lt.s32.totalorder %v824, 2
        %vm1374 = vcmp.lt.s32.totalorder %v825, 2
        %vm1375 = vcmp.lt.s32.totalorder %v826, 2
        %vm1376 = vcmp.lt.s32.totalorder %v827, 2
        %vm1377 = vcmp.lt.s32.totalorder %v828, 2
        %vm1378 = vcmp.lt.s32.totalorder %v829, 2
        %v1379 = vrot.slane %v605, 6
        %v1380 = vrot.slane %v606, 6
        %v1381 = vrot.slane %v607, 6
        %v1382 = vrot.slane %v608, 6
        %v1383 = vrot.slane %v609, 6
        %v1384 = vrot.slane %v610, 6
        %v1385 = vrot.slane %v611, 6
        %v1386 = vrot.slane %v612, 6
        %v1387 = vrot.slane %v613, 6
        %v1388 = vrot.slane %v614, 6
        %v1389 = vrot.slane %v615, 6
        %v1390 = vrot.slane %v616, 6
        %v1391 = vrot.slane %v617, 6
        %v1392 = vrot.slane %v618, 6
        %v1393 = vrot.slane %v619, 6
        %v1394 = vrot.slane %v620, 6
        %vm1395 = vcmp.lt.s32.totalorder %v622, 2
        %v1396 = vsel %vm1395, %v1393, %v1394
        %v1397 = vsel %vm1395, %v1392, %v1393
        %v1398 = vsel %vm1395, %v1391, %v1392
        %v1399 = vsel %vm1395, %v1390, %v1391
        %v1400 = vsel %vm1395, %v1389, %v1390
        %v1401 = vsel %vm1395, %v1388, %v1389
        %v1402 = vsel %vm1395, %v1387, %v1388
        %v1403 = vsel %vm1395, %v1386, %v1387
        %v1404 = vsel %vm1395, %v1385, %v1386
        %v1405 = vsel %vm1395, %v1384, %v1385
        %v1406 = vsel %vm1395, %v1383, %v1384
        %v1407 = vsel %vm1395, %v1382, %v1383
        %v1408 = vsel %vm1395, %v1381, %v1382
        %v1409 = vsel %vm1395, %v1380, %v1381
        %v1410 = vsel %vm1395, %v1379, %v1380
        %v1411 = vsel %vm1395, %v1394, %v1379
        %v1412 = vsel %vm1363, 1, 0
        %v1413 = vsel %vm1364, 1, 0
        %v1414 = vsel %vm1365, 1, 0
        %v1415 = vsel %vm1366, 1, 0
        %v1416 = vsel %vm1367, 1, 0
        %v1417 = vsel %vm1368, 1, 0
        %v1418 = vsel %vm1369, 1, 0
        %v1419 = vsel %vm1370, 1, 0
        %v1420 = vsel %vm1371, 1, 0
        %v1421 = vsel %vm1372, 1, 0
        %v1422 = vsel %vm1373, 1, 0
        %v1423 = vsel %vm1374, 1, 0
        %v1424 = vsel %vm1375, 1, 0
        %v1425 = vsel %vm1376, 1, 0
        %v1426 = vsel %vm1377, 1, 0
        %v1427 = vsel %vm1378, 1, 0
        %vm1428 = vcmp.eq.s32.totalorder %v1412, 1
        %vm1429 = vcmp.eq.s32.totalorder %v1413, 1
        %vm1430 = vcmp.eq.s32.totalorder %v1414, 1
        %vm1431 = vcmp.eq.s32.totalorder %v1415, 1
        %vm1432 = vcmp.eq.s32.totalorder %v1416, 1
        %vm1433 = vcmp.eq.s32.totalorder %v1417, 1
        %vm1434 = vcmp.eq.s32.totalorder %v1418, 1
        %vm1435 = vcmp.eq.s32.totalorder %v1419, 1
        %vm1436 = vcmp.eq.s32.totalorder %v1420, 1
        %vm1437 = vcmp.eq.s32.totalorder %v1421, 1
        %vm1438 = vcmp.eq.s32.totalorder %v1422, 1
        %vm1439 = vcmp.eq.s32.totalorder %v1423, 1
        %vm1440 = vcmp.eq.s32.totalorder %v1424, 1
        %vm1441 = vcmp.eq.s32.totalorder %v1425, 1
        %vm1442 = vcmp.eq.s32.totalorder %v1426, 1
        %vm1443 = vcmp.eq.s32.totalorder %v1427, 1
        %v1444 = vsel %vm1428, 0.0, %v1411
        %v1445 = vsel %vm1429, 0.0, %v1410
        %v1446 = vsel %vm1430, 0.0, %v1409
        %v1447 = vsel %vm1431, 0.0, %v1408
        %v1448 = vsel %vm1432, 0.0, %v1407
        %v1449 = vsel %vm1433, 0.0, %v1406
        %v1450 = vsel %vm1434, 0.0, %v1405
        %v1451 = vsel %vm1435, 0.0, %v1404
        %v1452 = vsel %vm1436, 0.0, %v1403
        %v1453 = vsel %vm1437, 0.0, %v1402
        %v1454 = vsel %vm1438, 0.0, %v1401
        %v1455 = vsel %vm1439, 0.0, %v1400
        %v1456 = vsel %vm1440, 0.0, %v1399
        %v1457 = vsel %vm1441, 0.0, %v1398
        %v1458 = vsel %vm1442, 0.0, %v1397
        %v1459 = vsel %vm1443, 0.0, %v1396
        %v1460 = vpack.c.bf16 %v1445, %v1444
        %v1461 = vpack.c.bf16 %v1447, %v1446
        %v1462 = vpack.c.bf16 %v1449, %v1448
        %v1463 = vpack.c.bf16 %v1451, %v1450
        %v1464 = vpack.c.bf16 %v1453, %v1452
        %v1465 = vpack.c.bf16 %v1455, %v1454
        %v1466 = vpack.c.bf16 %v1457, %v1456
        %v1467 = vpack.c.bf16 %v1459, %v1458
        %s1468 = scalar_lea.vmem [#allocation2], 128
        %v1469 = vld [vmem:[%s1468] sm:$0xf]
        %v1470 = vld [vmem:[%s1468 + $0x4] sm:$0xf]
        %v1471 = vld [vmem:[%s1468 + $0x8] sm:$0xf]
        %v1472 = vld [vmem:[%s1468 + $0xc] sm:$0xf]
        %v1473 = vld [vmem:[%s1468 + $0x10] sm:$0xf]
        %v1474 = vld [vmem:[%s1468 + $0x14] sm:$0xf]
        %v1475 = vld [vmem:[%s1468 + $0x18] sm:$0xf]
        %v1476 = vld [vmem:[%s1468 + $0x1c] sm:$0xf]
        %v1477 = vld [vmem:[%s1468 + $0x20] sm:$0xf]
        %v1478 = vld [vmem:[%s1468 + $0x24] sm:$0xf]
        %v1479 = vld [vmem:[%s1468 + $0x28] sm:$0xf]
        %v1480 = vld [vmem:[%s1468 + $0x2c] sm:$0xf]
        %v1481 = vld [vmem:[%s1468 + $0x30] sm:$0xf]
        %v1482 = vld [vmem:[%s1468 + $0x34] sm:$0xf]
        %v1483 = vld [vmem:[%s1468 + $0x38] sm:$0xf]
        %v1484 = vld [vmem:[%s1468 + $0x3c] sm:$0xf]
        %v1501 = vunpack.c.l.b16 %v1469
        %v1502 = vunpack.c.l.b16 %v1470
        %v1503 = vunpack.c.l.b16 %v1471
        %v1504 = vunpack.c.l.b16 %v1472
        %v1505 = vunpack.c.l.b16 %v1473
        %v1506 = vunpack.c.l.b16 %v1474
        %v1507 = vunpack.c.l.b16 %v1475
        %v1508 = vunpack.c.l.b16 %v1476
        %v1509 = vunpack.c.l.b16 %v1477
        %v1510 = vunpack.c.l.b16 %v1478
        %v1511 = vunpack.c.l.b16 %v1479
        %v1512 = vunpack.c.l.b16 %v1480
        %v1513 = vunpack.c.l.b16 %v1481
        %v1514 = vunpack.c.l.b16 %v1482
        %v1515 = vunpack.c.l.b16 %v1483
        %v1516 = vunpack.c.l.b16 %v1484
        %v1517 = vpack.c.b16 %v1502, %v1501
        %v1518 = vpack.c.b16 %v1504, %v1503
        %v1519 = vpack.c.b16 %v1506, %v1505
        %v1520 = vpack.c.b16 %v1508, %v1507
        %v1521 = vpack.c.b16 %v1510, %v1509
        %v1522 = vpack.c.b16 %v1512, %v1511
        %v1523 = vpack.c.b16 %v1514, %v1513
        %v1524 = vpack.c.b16 %v1516, %v1515
        %1533 = vmatprep.subr.bf16.mxu0 0
        %1534 = vmatpush1.bf16.msra.mxu0 %v1517
        %1535 = vmatprep.subr.bf16.mxu0 0
        %1536 = vmatpush1.bf16.msra.mxu0 %v1518
        %1537 = vmatprep.subr.bf16.mxu0 0
        %1538 = vmatpush1.bf16.msra.mxu0 %v1519
        %1539 = vmatprep.subr.bf16.mxu0 0
        %1540 = vmatpush1.bf16.msra.mxu0 %v1520
        %1541 = vmatprep.subr.bf16.mxu0 0
        %1542 = vmatpush1.bf16.msra.mxu0 %v1521
        %1543 = vmatprep.subr.bf16.mxu0 0
        %1544 = vmatpush1.bf16.msra.mxu0 %v1522
        %1545 = vmatprep.subr.bf16.mxu0 0
        %1546 = vmatpush1.bf16.msra.mxu0 %v1523
        %1547 = vmatprep.subr.bf16.mxu0 0
        %1548 = vmatpush1.bf16.msra.mxu0 %v1524
        %1549 = vmatprep.subr.bf16.mxu0 0
        %1550 = vmatpush1.bf16.msra.mxu0 0
        %1551 = vmatprep.subr.bf16.mxu0 0
        %1552 = vmatpush1.bf16.msra.mxu0 0
        %1553 = vmatprep.subr.bf16.mxu0 0
        %1554 = vmatpush1.bf16.msra.mxu0 0
        %1555 = vmatprep.subr.bf16.mxu0 0
        %1556 = vmatpush1.bf16.msra.mxu0 0
        %1557 = vmatprep.subr.bf16.mxu0 0
        %1558 = vmatpush1.bf16.msra.mxu0 0
        %1559 = vmatprep.subr.bf16.mxu0 0
        %1560 = vmatpush1.bf16.msra.mxu0 0
        %1561 = vmatprep.subr.bf16.mxu0 0
        %1562 = vmatpush1.bf16.msra.mxu0 0
        %1563 = vmatprep.subr.bf16.mxu0 0
        %1564 = vmatpush1.bf16.msra.mxu0 0
        %1565 = vmatprep.mubr.bf16.mxu0 0
        %1566 = vmatmul.mubr.bf16.gmra.mrb[0].mxu0 %v1460
        %v1567 = vpop.f32.mrb[0].mxu0
        %v1568 = vadd.f32 0.0, %v1567
        %v1569 = vpop.f32.mrb[0].mxu0
        %v1570 = vpop.f32.mrb[0].mxu0
        %v1571 = vadd.f32 0.0, %v1570
        %v1572 = vpop.f32.mrb[0].mxu0
        %1573 = vmatprep.mubr.bf16.mxu0 0
        %1574 = vmatmul.mubr.bf16.gmra.mrb[0].mxu0 %v1461
        %v1575 = vpop.f32.mrb[0].mxu0
        %v1576 = vadd.f32 0.0, %v1575
        %v1577 = vpop.f32.mrb[0].mxu0
        %v1578 = vpop.f32.mrb[0].mxu0
        %v1579 = vadd.f32 0.0, %v1578
        %v1580 = vpop.f32.mrb[0].mxu0
        %1581 = vmatprep.mubr.bf16.mxu0 0
        %1582 = vmatmul.mubr.bf16.gmra.mrb[0].mxu0 %v1462
        %v1583 = vpop.f32.mrb[0].mxu0
        %v1584 = vadd.f32 0.0, %v1583
        %v1585 = vpop.f32.mrb[0].mxu0
        %v1586 = vpop.f32.mrb[0].mxu0
        %v1587 = vadd.f32 0.0, %v1586
        %v1588 = vpop.f32.mrb[0].mxu0
        %1589 = vmatprep.mubr.bf16.mxu0 0
        %1590 = vmatmul.mubr.bf16.gmra.mrb[0].mxu0 %v1463
        %v1591 = vpop.f32.mrb[0].mxu0
        %v1592 = vadd.f32 0.0, %v1591
        %v1593 = vpop.f32.mrb[0].mxu0
        %v1594 = vpop.f32.mrb[0].mxu0
        %v1595 = vadd.f32 0.0, %v1594
        %v1596 = vpop.f32.mrb[0].mxu0
        %1597 = vmatprep.mubr.bf16.mxu0 0
        %1598 = vmatmul.mubr.bf16.gmra.mrb[0].mxu0 %v1464
        %v1599 = vpop.f32.mrb[0].mxu0
        %v1600 = vadd.f32 0.0, %v1599
        %v1601 = vpop.f32.mrb[0].mxu0
        %v1602 = vpop.f32.mrb[0].mxu0
        %v1603 = vadd.f32 0.0, %v1602
        %v1604 = vpop.f32.mrb[0].mxu0
        %1605 = vmatprep.mubr.bf16.mxu0 0
        %1606 = vmatmul.mubr.bf16.gmra.mrb[0].mxu0 %v1465
        %v1607 = vpop.f32.mrb[0].mxu0
        %v1608 = vadd.f32 0.0, %v1607
        %v1609 = vpop.f32.mrb[0].mxu0
        %v1610 = vpop.f32.mrb[0].mxu0
        %v1611 = vadd.f32 0.0, %v1610
        %v1612 = vpop.f32.mrb[0].mxu0
        %1613 = vmatprep.mubr.bf16.mxu0 0
        %1614 = vmatmul.mubr.bf16.gmra.mrb[0].mxu0 %v1466
        %v1615 = vpop.f32.mrb[0].mxu0
        %v1616 = vadd.f32 0.0, %v1615
        %v1617 = vpop.f32.mrb[0].mxu0
        %v1618 = vpop.f32.mrb[0].mxu0
        %v1619 = vadd.f32 0.0, %v1618
        %v1620 = vpop.f32.mrb[0].mxu0
        %1621 = vmatprep.mubr.bf16.mxu0 0
        %1622 = vmatmul.mubr.bf16.gmra.mrb[0].mxu0 %v1467
        %v1623 = vpop.f32.mrb[0].mxu0
        %v1624 = vadd.f32 0.0, %v1623
        %v1625 = vpop.f32.mrb[0].mxu0
        %v1626 = vpop.f32.mrb[0].mxu0
        %v1627 = vadd.f32 0.0, %v1626
        %v1628 = vpop.f32.mrb[0].mxu0
        %1629 = vdwg.mxu0
        %v1630 = vadd.f32 %v1301, %v1568
        %v1631 = vadd.f32 %v1304, %v1571
        %v1632 = vadd.f32 %v1309, %v1576
        %v1633 = vadd.f32 %v1312, %v1579
        %v1634 = vadd.f32 %v1317, %v1584
        %v1635 = vadd.f32 %v1320, %v1587
        %v1636 = vadd.f32 %v1325, %v1592
        %v1637 = vadd.f32 %v1328, %v1595
        %v1638 = vadd.f32 %v1333, %v1600
        %v1639 = vadd.f32 %v1336, %v1603
        %v1640 = vadd.f32 %v1341, %v1608
        %v1641 = vadd.f32 %v1344, %v1611
        %v1642 = vadd.f32 %v1349, %v1616
        %v1643 = vadd.f32 %v1352, %v1619
        %v1644 = vadd.f32 %v1357, %v1624
        %v1645 = vadd.f32 %v1360, %v1627
        %vm1646 = vcmp.lt.s32.totalorder %v814, 1
        %vm1647 = vcmp.lt.s32.totalorder %v815, 1
        %vm1648 = vcmp.lt.s32.totalorder %v816, 1
        %vm1649 = vcmp.lt.s32.totalorder %v817, 1
        %vm1650 = vcmp.lt.s32.totalorder %v818, 1
        %vm1651 = vcmp.lt.s32.totalorder %v819, 1
        %vm1652 = vcmp.lt.s32.totalorder %v820, 1
        %vm1653 = vcmp.lt.s32.totalorder %v821, 1
        %vm1654 = vcmp.lt.s32.totalorder %v822, 1
        %vm1655 = vcmp.lt.s32.totalorder %v823, 1
        %vm1656 = vcmp.lt.s32.totalorder %v824, 1
        %vm1657 = vcmp.lt.s32.totalorder %v825, 1
        %vm1658 = vcmp.lt.s32.totalorder %v826, 1
        %vm1659 = vcmp.lt.s32.totalorder %v827, 1
        %vm1660 = vcmp.lt.s32.totalorder %v828, 1
        %vm1661 = vcmp.lt.s32.totalorder %v829, 1
        %v1662 = vrot.slane %v605, 7
        %v1663 = vrot.slane %v606, 7
        %v1664 = vrot.slane %v607, 7
        %v1665 = vrot.slane %v608, 7
        %v1666 = vrot.slane %v609, 7
        %v1667 = vrot.slane %v610, 7
        %v1668 = vrot.slane %v611, 7
        %v1669 = vrot.slane %v612, 7
        %v1670 = vrot.slane %v613, 7
        %v1671 = vrot.slane %v614, 7
        %v1672 = vrot.slane %v615, 7
        %v1673 = vrot.slane %v616, 7
        %v1674 = vrot.slane %v617, 7
        %v1675 = vrot.slane %v618, 7
        %v1676 = vrot.slane %v619, 7
        %v1677 = vrot.slane %v620, 7
        %vm1678 = vcmp.lt.s32.totalorder %v622, 1
        %v1679 = vsel %vm1678, %v1676, %v1677
        %v1680 = vsel %vm1678, %v1675, %v1676
        %v1681 = vsel %vm1678, %v1674, %v1675
        %v1682 = vsel %vm1678, %v1673, %v1674
        %v1683 = vsel %vm1678, %v1672, %v1673
        %v1684 = vsel %vm1678, %v1671, %v1672
        %v1685 = vsel %vm1678, %v1670, %v1671
        %v1686 = vsel %vm1678, %v1669, %v1670
        %v1687 = vsel %vm1678, %v1668, %v1669
        %v1688 = vsel %vm1678, %v1667, %v1668
        %v1689 = vsel %vm1678, %v1666, %v1667
        %v1690 = vsel %vm1678, %v1665, %v1666
        %v1691 = vsel %vm1678, %v1664, %v1665
        %v1692 = vsel %vm1678, %v1663, %v1664
        %v1693 = vsel %vm1678, %v1662, %v1663
        %v1694 = vsel %vm1678, %v1677, %v1662
        %v1695 = vsel %vm1646, 1, 0
        %v1696 = vsel %vm1647, 1, 0
        %v1697 = vsel %vm1648, 1, 0
        %v1698 = vsel %vm1649, 1, 0
        %v1699 = vsel %vm1650, 1, 0
        %v1700 = vsel %vm1651, 1, 0
        %v1701 = vsel %vm1652, 1, 0
        %v1702 = vsel %vm1653, 1, 0
        %v1703 = vsel %vm1654, 1, 0
        %v1704 = vsel %vm1655, 1, 0
        %v1705 = vsel %vm1656, 1, 0
        %v1706 = vsel %vm1657, 1, 0
        %v1707 = vsel %vm1658, 1, 0
        %v1708 = vsel %vm1659, 1, 0
        %v1709 = vsel %vm1660, 1, 0
        %v1710 = vsel %vm1661, 1, 0
        %vm1711 = vcmp.eq.s32.totalorder %v1695, 1
        %vm1712 = vcmp.eq.s32.totalorder %v1696, 1
        %vm1713 = vcmp.eq.s32.totalorder %v1697, 1
        %vm1714 = vcmp.eq.s32.totalorder %v1698, 1
        %vm1715 = vcmp.eq.s32.totalorder %v1699, 1
        %vm1716 = vcmp.eq.s32.totalorder %v1700, 1
        %vm1717 = vcmp.eq.s32.totalorder %v1701, 1
        %vm1718 = vcmp.eq.s32.totalorder %v1702, 1
        %vm1719 = vcmp.eq.s32.totalorder %v1703, 1
        %vm1720 = vcmp.eq.s32.totalorder %v1704, 1
        %vm1721 = vcmp.eq.s32.totalorder %v1705, 1
        %vm1722 = vcmp.eq.s32.totalorder %v1706, 1
        %vm1723 = vcmp.eq.s32.totalorder %v1707, 1
        %vm1724 = vcmp.eq.s32.totalorder %v1708, 1
        %vm1725 = vcmp.eq.s32.totalorder %v1709, 1
        %vm1726 = vcmp.eq.s32.totalorder %v1710, 1
        %v1727 = vsel %vm1711, 0.0, %v1694
        %v1728 = vsel %vm1712, 0.0, %v1693
        %v1729 = vsel %vm1713, 0.0, %v1692
        %v1730 = vsel %vm1714, 0.0, %v1691
        %v1731 = vsel %vm1715, 0.0, %v1690
        %v1732 = vsel %vm1716, 0.0, %v1689
        %v1733 = vsel %vm1717, 0.0, %v1688
        %v1734 = vsel %vm1718, 0.0, %v1687
        %v1735 = vsel %vm1719, 0.0, %v1686
        %v1736 = vsel %vm1720, 0.0, %v1685
        %v1737 = vsel %vm1721, 0.0, %v1684
        %v1738 = vsel %vm1722, 0.0, %v1683
        %v1739 = vsel %vm1723, 0.0, %v1682
        %v1740 = vsel %vm1724, 0.0, %v1681
        %v1741 = vsel %vm1725, 0.0, %v1680
        %v1742 = vsel %vm1726, 0.0, %v1679
        %v1743 = vpack.c.bf16 %v1728, %v1727
        %v1744 = vpack.c.bf16 %v1730, %v1729
        %v1745 = vpack.c.bf16 %v1732, %v1731
        %v1746 = vpack.c.bf16 %v1734, %v1733
        %v1747 = vpack.c.bf16 %v1736, %v1735
        %v1748 = vpack.c.bf16 %v1738, %v1737
        %v1749 = vpack.c.bf16 %v1740, %v1739
        %v1750 = vpack.c.bf16 %v1742, %v1741
        %s1751 = scalar_lea.vmem [#allocation2], 192
        %v1752 = vld [vmem:[%s1751] sm:$0xf]
        %v1753 = vld [vmem:[%s1751 + $0x4] sm:$0xf]
        %v1754 = vld [vmem:[%s1751 + $0x8] sm:$0xf]
        %v1755 = vld [vmem:[%s1751 + $0xc] sm:$0xf]
        %v1756 = vld [vmem:[%s1751 + $0x10] sm:$0xf]
        %v1757 = vld [vmem:[%s1751 + $0x14] sm:$0xf]
        %v1758 = vld [vmem:[%s1751 + $0x18] sm:$0xf]
        %v1759 = vld [vmem:[%s1751 + $0x1c] sm:$0xf]
        %v1760 = vld [vmem:[%s1751 + $0x20] sm:$0xf]
        %v1761 = vld [vmem:[%s1751 + $0x24] sm:$0xf]
        %v1762 = vld [vmem:[%s1751 + $0x28] sm:$0xf]
        %v1763 = vld [vmem:[%s1751 + $0x2c] sm:$0xf]
        %v1764 = vld [vmem:[%s1751 + $0x30] sm:$0xf]
        %v1765 = vld [vmem:[%s1751 + $0x34] sm:$0xf]
        %v1766 = vld [vmem:[%s1751 + $0x38] sm:$0xf]
        %v1767 = vld [vmem:[%s1751 + $0x3c] sm:$0xf]
        %v1784 = vunpack.c.l.b16 %v1752
        %v1785 = vunpack.c.l.b16 %v1753
        %v1786 = vunpack.c.l.b16 %v1754
        %v1787 = vunpack.c.l.b16 %v1755
        %v1788 = vunpack.c.l.b16 %v1756
        %v1789 = vunpack.c.l.b16 %v1757
        %v1790 = vunpack.c.l.b16 %v1758
        %v1791 = vunpack.c.l.b16 %v1759
        %v1792 = vunpack.c.l.b16 %v1760
        %v1793 = vunpack.c.l.b16 %v1761
        %v1794 = vunpack.c.l.b16 %v1762
        %v1795 = vunpack.c.l.b16 %v1763
        %v1796 = vunpack.c.l.b16 %v1764
        %v1797 = vunpack.c.l.b16 %v1765
        %v1798 = vunpack.c.l.b16 %v1766
        %v1799 = vunpack.c.l.b16 %v1767
        %v1800 = vpack.c.b16 %v1785, %v1784
        %v1801 = vpack.c.b16 %v1787, %v1786
        %v1802 = vpack.c.b16 %v1789, %v1788
        %v1803 = vpack.c.b16 %v1791, %v1790
        %v1804 = vpack.c.b16 %v1793, %v1792
        %v1805 = vpack.c.b16 %v1795, %v1794
        %v1806 = vpack.c.b16 %v1797, %v1796
        %v1807 = vpack.c.b16 %v1799, %v1798
        %1816 = vmatprep.subr.bf16.mxu0 0
        %1817 = vmatpush1.bf16.msra.mxu0 %v1800
        %1818 = vmatprep.subr.bf16.mxu0 0
        %1819 = vmatpush1.bf16.msra.mxu0 %v1801
        %1820 = vmatprep.subr.bf16.mxu0 0
        %1821 = vmatpush1.bf16.msra.mxu0 %v1802
        %1822 = vmatprep.subr.bf16.mxu0 0
        %1823 = vmatpush1.bf16.msra.mxu0 %v1803
        %1824 = vmatprep.subr.bf16.mxu0 0
        %1825 = vmatpush1.bf16.msra.mxu0 %v1804
        %1826 = vmatprep.subr.bf16.mxu0 0
        %1827 = vmatpush1.bf16.msra.mxu0 %v1805
        %1828 = vmatprep.subr.bf16.mxu0 0
        %1829 = vmatpush1.bf16.msra.mxu0 %v1806
        %1830 = vmatprep.subr.bf16.mxu0 0
        %1831 = vmatpush1.bf16.msra.mxu0 %v1807
        %1832 = vmatprep.subr.bf16.mxu0 0
        %1833 = vmatpush1.bf16.msra.mxu0 0
        %1834 = vmatprep.subr.bf16.mxu0 0
        %1835 = vmatpush1.bf16.msra.mxu0 0
        %1836 = vmatprep.subr.bf16.mxu0 0
        %1837 = vmatpush1.bf16.msra.mxu0 0
        %1838 = vmatprep.subr.bf16.mxu0 0
        %1839 = vmatpush1.bf16.msra.mxu0 0
        %1840 = vmatprep.subr.bf16.mxu0 0
        %1841 = vmatpush1.bf16.msra.mxu0 0
        %1842 = vmatprep.subr.bf16.mxu0 0
        %1843 = vmatpush1.bf16.msra.mxu0 0
        %1844 = vmatprep.subr.bf16.mxu0 0
        %1845 = vmatpush1.bf16.msra.mxu0 0
        %1846 = vmatprep.subr.bf16.mxu0 0
        %1847 = vmatpush1.bf16.msra.mxu0 0
        %1848 = vmatprep.mubr.bf16.mxu0 0
        %1849 = vmatmul.mubr.bf16.gmra.mrb[0].mxu0 %v1743
        %v1850 = vpop.f32.mrb[0].mxu0
        %v1851 = vadd.f32 0.0, %v1850
        %v1852 = vpop.f32.mrb[0].mxu0
        %v1853 = vpop.f32.mrb[0].mxu0
        %v1854 = vadd.f32 0.0, %v1853
        %v1855 = vpop.f32.mrb[0].mxu0
        %1856 = vmatprep.mubr.bf16.mxu0 0
        %1857 = vmatmul.mubr.bf16.gmra.mrb[0].mxu0 %v1744
        %v1858 = vpop.f32.mrb[0].mxu0
        %v1859 = vadd.f32 0.0, %v1858
        %v1860 = vpop.f32.mrb[0].mxu0
        %v1861 = vpop.f32.mrb[0].mxu0
        %v1862 = vadd.f32 0.0, %v1861
        %v1863 = vpop.f32.mrb[0].mxu0
        %1864 = vmatprep.mubr.bf16.mxu0 0
        %1865 = vmatmul.mubr.bf16.gmra.mrb[0].mxu0 %v1745
        %v1866 = vpop.f32.mrb[0].mxu0
        %v1867 = vadd.f32 0.0, %v1866
        %v1868 = vpop.f32.mrb[0].mxu0
        %v1869 = vpop.f32.mrb[0].mxu0
        %v1870 = vadd.f32 0.0, %v1869
        %v1871 = vpop.f32.mrb[0].mxu0
        %1872 = vmatprep.mubr.bf16.mxu0 0
        %1873 = vmatmul.mubr.bf16.gmra.mrb[0].mxu0 %v1746
        %v1874 = vpop.f32.mrb[0].mxu0
        %v1875 = vadd.f32 0.0, %v1874
        %v1876 = vpop.f32.mrb[0].mxu0
        %v1877 = vpop.f32.mrb[0].mxu0
        %v1878 = vadd.f32 0.0, %v1877
        %v1879 = vpop.f32.mrb[0].mxu0
        %1880 = vmatprep.mubr.bf16.mxu0 0
        %1881 = vmatmul.mubr.bf16.gmra.mrb[0].mxu0 %v1747
        %v1882 = vpop.f32.mrb[0].mxu0
        %v1883 = vadd.f32 0.0, %v1882
        %v1884 = vpop.f32.mrb[0].mxu0
        %v1885 = vpop.f32.mrb[0].mxu0
        %v1886 = vadd.f32 0.0, %v1885
        %v1887 = vpop.f32.mrb[0].mxu0
        %1888 = vmatprep.mubr.bf16.mxu0 0
        %1889 = vmatmul.mubr.bf16.gmra.mrb[0].mxu0 %v1748
        %v1890 = vpop.f32.mrb[0].mxu0
        %v1891 = vadd.f32 0.0, %v1890
        %v1892 = vpop.f32.mrb[0].mxu0
        %v1893 = vpop.f32.mrb[0].mxu0
        %v1894 = vadd.f32 0.0, %v1893
        %v1895 = vpop.f32.mrb[0].mxu0
        %1896 = vmatprep.mubr.bf16.mxu0 0
        %1897 = vmatmul.mubr.bf16.gmra.mrb[0].mxu0 %v1749
        %v1898 = vpop.f32.mrb[0].mxu0
        %v1899 = vadd.f32 0.0, %v1898
        %v1900 = vpop.f32.mrb[0].mxu0
        %v1901 = vpop.f32.mrb[0].mxu0
        %v1902 = vadd.f32 0.0, %v1901
        %v1903 = vpop.f32.mrb[0].mxu0
        %1904 = vmatprep.mubr.bf16.mxu0 0
        %1905 = vmatmul.mubr.bf16.gmra.mrb[0].mxu0 %v1750
        %v1906 = vpop.f32.mrb[0].mxu0
        %v1907 = vadd.f32 0.0, %v1906
        %v1908 = vpop.f32.mrb[0].mxu0
        %v1909 = vpop.f32.mrb[0].mxu0
        %v1910 = vadd.f32 0.0, %v1909
        %v1911 = vpop.f32.mrb[0].mxu0
        %1912 = vdwg.mxu0
        %v1913 = vadd.f32 %v1630, %v1851
        %v1914 = vadd.f32 %v1631, %v1854
        %v1915 = vadd.f32 %v1632, %v1859
        %v1916 = vadd.f32 %v1633, %v1862
        %v1917 = vadd.f32 %v1634, %v1867
        %v1918 = vadd.f32 %v1635, %v1870
        %v1919 = vadd.f32 %v1636, %v1875
        %v1920 = vadd.f32 %v1637, %v1878
        %v1921 = vadd.f32 %v1638, %v1883
        %v1922 = vadd.f32 %v1639, %v1886
        %v1923 = vadd.f32 %v1640, %v1891
        %v1924 = vadd.f32 %v1641, %v1894
        %v1925 = vadd.f32 %v1642, %v1899
        %v1926 = vadd.f32 %v1643, %v1902
        %v1927 = vadd.f32 %v1644, %v1907
        %v1928 = vadd.f32 %v1645, %v1910
        %v1929 = vpack.c.bf16 %v606, %v605
        %v1930 = vpack.c.bf16 %v608, %v607
        %v1931 = vpack.c.bf16 %v610, %v609
        %v1932 = vpack.c.bf16 %v612, %v611
        %v1933 = vpack.c.bf16 %v614, %v613
        %v1934 = vpack.c.bf16 %v616, %v615
        %v1935 = vpack.c.bf16 %v618, %v617
        %v1936 = vpack.c.bf16 %v620, %v619
        %s1937 = scalar_lea.vmem [#allocation2], 256
        %v1938 = vld [vmem:[%s1937] sm:$0xf]
        %v1939 = vld [vmem:[%s1937 + $0x4] sm:$0xf]
        %v1940 = vld [vmem:[%s1937 + $0x8] sm:$0xf]
        %v1941 = vld [vmem:[%s1937 + $0xc] sm:$0xf]
        %v1942 = vld [vmem:[%s1937 + $0x10] sm:$0xf]
        %v1943 = vld [vmem:[%s1937 + $0x14] sm:$0xf]
        %v1944 = vld [vmem:[%s1937 + $0x18] sm:$0xf]
        %v1945 = vld [vmem:[%s1937 + $0x1c] sm:$0xf]
        %v1946 = vld [vmem:[%s1937 + $0x20] sm:$0xf]
        %v1947 = vld [vmem:[%s1937 + $0x24] sm:$0xf]
        %v1948 = vld [vmem:[%s1937 + $0x28] sm:$0xf]
        %v1949 = vld [vmem:[%s1937 + $0x2c] sm:$0xf]
        %v1950 = vld [vmem:[%s1937 + $0x30] sm:$0xf]
        %v1951 = vld [vmem:[%s1937 + $0x34] sm:$0xf]
        %v1952 = vld [vmem:[%s1937 + $0x38] sm:$0xf]
        %v1953 = vld [vmem:[%s1937 + $0x3c] sm:$0xf]
        %v1970 = vunpack.c.l.b16 %v1938
        %v1971 = vunpack.c.l.b16 %v1939
        %v1972 = vunpack.c.l.b16 %v1940
        %v1973 = vunpack.c.l.b16 %v1941
        %v1974 = vunpack.c.l.b16 %v1942
        %v1975 = vunpack.c.l.b16 %v1943
        %v1976 = vunpack.c.l.b16 %v1944
        %v1977 = vunpack.c.l.b16 %v1945
        %v1978 = vunpack.c.l.b16 %v1946
        %v1979 = vunpack.c.l.b16 %v1947
        %v1980 = vunpack.c.l.b16 %v1948
        %v1981 = vunpack.c.l.b16 %v1949
        %v1982 = vunpack.c.l.b16 %v1950
        %v1983 = vunpack.c.l.b16 %v1951
        %v1984 = vunpack.c.l.b16 %v1952
        %v1985 = vunpack.c.l.b16 %v1953
        %v1986 = vpack.c.b16 %v1971, %v1970
        %v1987 = vpack.c.b16 %v1973, %v1972
        %v1988 = vpack.c.b16 %v1975, %v1974
        %v1989 = vpack.c.b16 %v1977, %v1976
        %v1990 = vpack.c.b16 %v1979, %v1978
        %v1991 = vpack.c.b16 %v1981, %v1980
        %v1992 = vpack.c.b16 %v1983, %v1982
        %v1993 = vpack.c.b16 %v1985, %v1984
        %2002 = vmatprep.subr.bf16.mxu0 0
        %2003 = vmatpush1.bf16.msra.mxu0 %v1986
        %2004 = vmatprep.subr.bf16.mxu0 0
        %2005 = vmatpush1.bf16.msra.mxu0 %v1987
        %2006 = vmatprep.subr.bf16.mxu0 0
        %2007 = vmatpush1.bf16.msra.mxu0 %v1988
        %2008 = vmatprep.subr.bf16.mxu0 0
        %2009 = vmatpush1.bf16.msra.mxu0 %v1989
        %2010 = vmatprep.subr.bf16.mxu0 0
        %2011 = vmatpush1.bf16.msra.mxu0 %v1990
        %2012 = vmatprep.subr.bf16.mxu0 0
        %2013 = vmatpush1.bf16.msra.mxu0 %v1991
        %2014 = vmatprep.subr.bf16.mxu0 0
        %2015 = vmatpush1.bf16.msra.mxu0 %v1992
        %2016 = vmatprep.subr.bf16.mxu0 0
        %2017 = vmatpush1.bf16.msra.mxu0 %v1993
        %2018 = vmatprep.subr.bf16.mxu0 0
        %2019 = vmatpush1.bf16.msra.mxu0 0
        %2020 = vmatprep.subr.bf16.mxu0 0
        %2021 = vmatpush1.bf16.msra.mxu0 0
        %2022 = vmatprep.subr.bf16.mxu0 0
        %2023 = vmatpush1.bf16.msra.mxu0 0
        %2024 = vmatprep.subr.bf16.mxu0 0
        %2025 = vmatpush1.bf16.msra.mxu0 0
        %2026 = vmatprep.subr.bf16.mxu0 0
        %2027 = vmatpush1.bf16.msra.mxu0 0
        %2028 = vmatprep.subr.bf16.mxu0 0
        %2029 = vmatpush1.bf16.msra.mxu0 0
        %2030 = vmatprep.subr.bf16.mxu0 0
        %2031 = vmatpush1.bf16.msra.mxu0 0
        %2032 = vmatprep.subr.bf16.mxu0 0
        %2033 = vmatpush1.bf16.msra.mxu0 0
        %2034 = vmatprep.mubr.bf16.mxu0 0
        %2035 = vmatmul.mubr.bf16.gmra.mrb[0].mxu0 %v1929
        %v2036 = vpop.f32.mrb[0].mxu0
        %v2037 = vadd.f32 0.0, %v2036
        %v2038 = vpop.f32.mrb[0].mxu0
        %v2039 = vpop.f32.mrb[0].mxu0
        %v2040 = vadd.f32 0.0, %v2039
        %v2041 = vpop.f32.mrb[0].mxu0
        %2042 = vmatprep.mubr.bf16.mxu0 0
        %2043 = vmatmul.mubr.bf16.gmra.mrb[0].mxu0 %v1930
        %v2044 = vpop.f32.mrb[0].mxu0
        %v2045 = vadd.f32 0.0, %v2044
        %v2046 = vpop.f32.mrb[0].mxu0
        %v2047 = vpop.f32.mrb[0].mxu0
        %v2048 = vadd.f32 0.0, %v2047
        %v2049 = vpop.f32.mrb[0].mxu0
        %2050 = vmatprep.mubr.bf16.mxu0 0
        %2051 = vmatmul.mubr.bf16.gmra.mrb[0].mxu0 %v1931
        %v2052 = vpop.f32.mrb[0].mxu0
        %v2053 = vadd.f32 0.0, %v2052
        %v2054 = vpop.f32.mrb[0].mxu0
        %v2055 = vpop.f32.mrb[0].mxu0
        %v2056 = vadd.f32 0.0, %v2055
        %v2057 = vpop.f32.mrb[0].mxu0
        %2058 = vmatprep.mubr.bf16.mxu0 0
        %2059 = vmatmul.mubr.bf16.gmra.mrb[0].mxu0 %v1932
        %v2060 = vpop.f32.mrb[0].mxu0
        %v2061 = vadd.f32 0.0, %v2060
        %v2062 = vpop.f32.mrb[0].mxu0
        %v2063 = vpop.f32.mrb[0].mxu0
        %v2064 = vadd.f32 0.0, %v2063
        %v2065 = vpop.f32.mrb[0].mxu0
        %2066 = vmatprep.mubr.bf16.mxu0 0
        %2067 = vmatmul.mubr.bf16.gmra.mrb[0].mxu0 %v1933
        %v2068 = vpop.f32.mrb[0].mxu0
        %v2069 = vadd.f32 0.0, %v2068
        %v2070 = vpop.f32.mrb[0].mxu0
        %v2071 = vpop.f32.mrb[0].mxu0
        %v2072 = vadd.f32 0.0, %v2071
        %v2073 = vpop.f32.mrb[0].mxu0
        %2074 = vmatprep.mubr.bf16.mxu0 0
        %2075 = vmatmul.mubr.bf16.gmra.mrb[0].mxu0 %v1934
        %v2076 = vpop.f32.mrb[0].mxu0
        %v2077 = vadd.f32 0.0, %v2076
        %v2078 = vpop.f32.mrb[0].mxu0
        %v2079 = vpop.f32.mrb[0].mxu0
        %v2080 = vadd.f32 0.0, %v2079
        %v2081 = vpop.f32.mrb[0].mxu0
        %2082 = vmatprep.mubr.bf16.mxu0 0
        %2083 = vmatmul.mubr.bf16.gmra.mrb[0].mxu0 %v1935
        %v2084 = vpop.f32.mrb[0].mxu0
        %v2085 = vadd.f32 0.0, %v2084
        %v2086 = vpop.f32.mrb[0].mxu0
        %v2087 = vpop.f32.mrb[0].mxu0
        %v2088 = vadd.f32 0.0, %v2087
        %v2089 = vpop.f32.mrb[0].mxu0
        %2090 = vmatprep.mubr.bf16.mxu0 0
        %2091 = vmatmul.mubr.bf16.gmra.mrb[0].mxu0 %v1936
        %v2092 = vpop.f32.mrb[0].mxu0
        %v2093 = vadd.f32 0.0, %v2092
        %v2094 = vpop.f32.mrb[0].mxu0
        %v2095 = vpop.f32.mrb[0].mxu0
        %v2096 = vadd.f32 0.0, %v2095
        %v2097 = vpop.f32.mrb[0].mxu0
        %2098 = vdwg.mxu0
        %v2099 = vadd.f32 %v1913, %v2037
        %v2100 = vadd.f32 %v1914, %v2040
        %v2101 = vadd.f32 %v1915, %v2045
        %v2102 = vadd.f32 %v1916, %v2048
        %v2103 = vadd.f32 %v1917, %v2053
        %v2104 = vadd.f32 %v1918, %v2056
        %v2105 = vadd.f32 %v1919, %v2061
        %v2106 = vadd.f32 %v1920, %v2064
        %v2107 = vadd.f32 %v1921, %v2069
        %v2108 = vadd.f32 %v1922, %v2072
        %v2109 = vadd.f32 %v1923, %v2077
        %v2110 = vadd.f32 %v1924, %v2080
        %v2111 = vadd.f32 %v1925, %v2085
        %v2112 = vadd.f32 %v1926, %v2088
        %v2113 = vadd.f32 %v1927, %v2093
        %v2114 = vadd.f32 %v1928, %v2096
        %v2115 = vld [vmem:[%s3] sm:$0x1]
        %v2117 = vlaneseq
        %v2118 = vshrl.u32 %v2117, 7
        %v2119 = vsub.s32 0, %v2118
        %v2120 = vrot.slane %v2115, %v2119
        %v2122 = vadd.f32 %v2099, %v2120
        %v2123 = vadd.f32 %v2100, %v2120
        %v2124 = vadd.f32 %v2101, %v2120
        %v2125 = vadd.f32 %v2102, %v2120
        %v2126 = vadd.f32 %v2103, %v2120
        %v2127 = vadd.f32 %v2104, %v2120
        %v2128 = vadd.f32 %v2105, %v2120
        %v2129 = vadd.f32 %v2106, %v2120
        %v2130 = vadd.f32 %v2107, %v2120
        %v2131 = vadd.f32 %v2108, %v2120
        %v2132 = vadd.f32 %v2109, %v2120
        %v2133 = vadd.f32 %v2110, %v2120
        %v2134 = vadd.f32 %v2111, %v2120
        %v2135 = vadd.f32 %v2112, %v2120
        %v2136 = vadd.f32 %v2113, %v2120
        %v2137 = vadd.f32 %v2114, %v2120
        %v2138 = vmax.f32 %v2122, 0.0
        %v2139 = vmax.f32 %v2123, 0.0
        %v2140 = vmax.f32 %v2124, 0.0
        %v2141 = vmax.f32 %v2125, 0.0
        %v2142 = vmax.f32 %v2126, 0.0
        %v2143 = vmax.f32 %v2127, 0.0
        %v2144 = vmax.f32 %v2128, 0.0
        %v2145 = vmax.f32 %v2129, 0.0
        %v2146 = vmax.f32 %v2130, 0.0
        %v2147 = vmax.f32 %v2131, 0.0
        %v2148 = vmax.f32 %v2132, 0.0
        %v2149 = vmax.f32 %v2133, 0.0
        %v2150 = vmax.f32 %v2134, 0.0
        %v2151 = vmax.f32 %v2135, 0.0
        %v2152 = vmax.f32 %v2136, 0.0
        %v2153 = vmax.f32 %v2137, 0.0
        %v2154 = vmax.f32 %v2138, %v2139
        %v2155 = vrot.slane %v2154, 4
        %v2156 = vmax.f32 %v2154, %v2155
        %v2157 = vrot.slane %v2156, 2
        %v2158 = vmax.f32 %v2156, %v2157
        %v2159 = vrot.slane %v2158, 1
        %v2160 = vmax.f32 %v2158, %v2159
        %v2161 = vmax.f32 %v2140, %v2141
        %v2162 = vrot.slane %v2161, 4
        %v2163 = vmax.f32 %v2161, %v2162
        %v2164 = vrot.slane %v2163, 2
        %v2165 = vmax.f32 %v2163, %v2164
        %v2166 = vrot.slane %v2165, 1
        %v2167 = vmax.f32 %v2165, %v2166
        %v2168 = vmax.f32 %v2142, %v2143
        %v2169 = vrot.slane %v2168, 4
        %v2170 = vmax.f32 %v2168, %v2169
        %v2171 = vrot.slane %v2170, 2
        %v2172 = vmax.f32 %v2170, %v2171
        %v2173 = vrot.slane %v2172, 1
        %v2174 = vmax.f32 %v2172, %v2173
        %v2175 = vmax.f32 %v2144, %v2145
        %v2176 = vrot.slane %v2175, 4
        %v2177 = vmax.f32 %v2175, %v2176
        %v2178 = vrot.slane %v2177, 2
        %v2179 = vmax.f32 %v2177, %v2178
        %v2180 = vrot.slane %v2179, 1
        %v2181 = vmax.f32 %v2179, %v2180
        %v2182 = vmax.f32 %v2146, %v2147
        %v2183 = vrot.slane %v2182, 4
        %v2184 = vmax.f32 %v2182, %v2183
        %v2185 = vrot.slane %v2184, 2
        %v2186 = vmax.f32 %v2184, %v2185
        %v2187 = vrot.slane %v2186, 1
        %v2188 = vmax.f32 %v2186, %v2187
        %v2189 = vmax.f32 %v2148, %v2149
        %v2190 = vrot.slane %v2189, 4
        %v2191 = vmax.f32 %v2189, %v2190
        %v2192 = vrot.slane %v2191, 2
        %v2193 = vmax.f32 %v2191, %v2192
        %v2194 = vrot.slane %v2193, 1
        %v2195 = vmax.f32 %v2193, %v2194
        %v2196 = vmax.f32 %v2150, %v2151
        %v2197 = vrot.slane %v2196, 4
        %v2198 = vmax.f32 %v2196, %v2197
        %v2199 = vrot.slane %v2198, 2
        %v2200 = vmax.f32 %v2198, %v2199
        %v2201 = vrot.slane %v2200, 1
        %v2202 = vmax.f32 %v2200, %v2201
        %v2203 = vmax.f32 %v2152, %v2153
        %v2204 = vrot.slane %v2203, 4
        %v2205 = vmax.f32 %v2203, %v2204
        %v2206 = vrot.slane %v2205, 2
        %v2207 = vmax.f32 %v2205, %v2206
        %v2208 = vrot.slane %v2207, 1
        %v2209 = vmax.f32 %v2207, %v2208
        %v2210 = vpack.c.bf16 %v2160, %v2160
        %v2211 = vpack.c.bf16 %v2167, %v2167
        %v2212 = vpack.c.bf16 %v2174, %v2174
        %v2213 = vpack.c.bf16 %v2181, %v2181
        %v2214 = vpack.c.bf16 %v2188, %v2188
        %v2215 = vpack.c.bf16 %v2195, %v2195
        %v2216 = vpack.c.bf16 %v2202, %v2202
        %v2217 = vpack.c.bf16 %v2209, %v2209
        %v2218 = vld [vmem:[%s4] sm:$0xf]
        %v2219 = vld [vmem:[%s4 + $0x4] sm:$0xf]
        %v2220 = vld [vmem:[%s4 + $0x8] sm:$0xf]
        %v2221 = vld [vmem:[%s4 + $0xc] sm:$0xf]
        %v2222 = vld [vmem:[%s4 + $0x10] sm:$0xf]
        %v2223 = vld [vmem:[%s4 + $0x14] sm:$0xf]
        %v2224 = vld [vmem:[%s4 + $0x18] sm:$0xf]
        %v2225 = vld [vmem:[%s4 + $0x1c] sm:$0xf]
        %v2226 = vld [vmem:[%s4 + $0x20] sm:$0xf]
        %v2227 = vld [vmem:[%s4 + $0x24] sm:$0xf]
        %v2228 = vld [vmem:[%s4 + $0x28] sm:$0xf]
        %v2229 = vld [vmem:[%s4 + $0x2c] sm:$0xf]
        %v2230 = vld [vmem:[%s4 + $0x30] sm:$0xf]
        %v2231 = vld [vmem:[%s4 + $0x34] sm:$0xf]
        %v2232 = vld [vmem:[%s4 + $0x38] sm:$0xf]
        %v2233 = vld [vmem:[%s4 + $0x3c] sm:$0xf]
        %v2234 = vld [vmem:[%s5] sm:$0x1]
        %v2236 = vlaneseq
        %v2237 = vshrl.u32 %v2236, 7
        %v2238 = vsub.s32 0, %v2237
        %v2239 = vrot.slane %v2234, %v2238
        %v2249 = vunpack.c.l.b16 %v2210
        %v2250 = vunpack.c.l.b16 %v2211
        %v2251 = vunpack.c.l.b16 %v2212
        %v2252 = vunpack.c.l.b16 %v2213
        %v2253 = vunpack.c.l.b16 %v2214
        %v2254 = vunpack.c.l.b16 %v2215
        %v2255 = vunpack.c.l.b16 %v2216
        %v2256 = vunpack.c.l.b16 %v2217
        %vm2257 = vcmask 1041409
        %v2258 = vsel %vm2257, %v2250, %v2249
        %vm2259 = vcmask 1042434
        %v2260 = vsel %vm2259, %v2251, %v2258
        %vm2261 = vcmask 1043459
        %v2262 = vsel %vm2261, %v2252, %v2260
        %vm2263 = vcmask 1044484
        %v2264 = vsel %vm2263, %v2253, %v2262
        %vm2265 = vcmask 1045509
        %v2266 = vsel %vm2265, %v2254, %v2264
        %vm2267 = vcmask 1046534
        %v2268 = vsel %vm2267, %v2255, %v2266
        %vm2269 = vcmask 1047559
        %v2270 = vsel %vm2269, %v2256, %v2268
        %v2271 = vpack.c.b16 %v2270, %v2270
        %v2289 = vunpack.c.l.b16 %v2218
        %v2290 = vunpack.c.l.b16 %v2219
        %v2291 = vunpack.c.l.b16 %v2220
        %v2292 = vunpack.c.l.b16 %v2221
        %v2293 = vunpack.c.l.b16 %v2222
        %v2294 = vunpack.c.l.b16 %v2223
        %v2295 = vunpack.c.l.b16 %v2224
        %v2296 = vunpack.c.l.b16 %v2225
        %v2297 = vunpack.c.l.b16 %v2226
        %v2298 = vunpack.c.l.b16 %v2227
        %v2299 = vunpack.c.l.b16 %v2228
        %v2300 = vunpack.c.l.b16 %v2229
        %v2301 = vunpack.c.l.b16 %v2230
        %v2302 = vunpack.c.l.b16 %v2231
        %v2303 = vunpack.c.l.b16 %v2232
        %v2304 = vunpack.c.l.b16 %v2233
        %v2305 = vpack.c.b16 %v2290, %v2289
        %v2306 = vpack.c.b16 %v2292, %v2291
        %v2307 = vpack.c.b16 %v2294, %v2293
        %v2308 = vpack.c.b16 %v2296, %v2295
        %v2309 = vpack.c.b16 %v2298, %v2297
        %v2310 = vpack.c.b16 %v2300, %v2299
        %v2311 = vpack.c.b16 %v2302, %v2301
        %v2312 = vpack.c.b16 %v2304, %v2303
        %2321 = vmatprep.subr.bf16.mxu0 0
        %2322 = vmatpush1.bf16.msra.mxu0 %v2305
        %2323 = vmatprep.subr.bf16.mxu0 0
        %2324 = vmatpush1.bf16.msra.mxu0 %v2306
        %2325 = vmatprep.subr.bf16.mxu0 0
        %2326 = vmatpush1.bf16.msra.mxu0 %v2307
        %2327 = vmatprep.subr.bf16.mxu0 0
        %2328 = vmatpush1.bf16.msra.mxu0 %v2308
        %2329 = vmatprep.subr.bf16.mxu0 0
        %2330 = vmatpush1.bf16.msra.mxu0 %v2309
        %2331 = vmatprep.subr.bf16.mxu0 0
        %2332 = vmatpush1.bf16.msra.mxu0 %v2310
        %2333 = vmatprep.subr.bf16.mxu0 0
        %2334 = vmatpush1.bf16.msra.mxu0 %v2311
        %2335 = vmatprep.subr.bf16.mxu0 0
        %2336 = vmatpush1.bf16.msra.mxu0 %v2312
        %2337 = vmatprep.subr.bf16.mxu0 0
        %2338 = vmatpush1.bf16.msra.mxu0 0
        %2339 = vmatprep.subr.bf16.mxu0 0
        %2340 = vmatpush1.bf16.msra.mxu0 0
        %2341 = vmatprep.subr.bf16.mxu0 0
        %2342 = vmatpush1.bf16.msra.mxu0 0
        %2343 = vmatprep.subr.bf16.mxu0 0
        %2344 = vmatpush1.bf16.msra.mxu0 0
        %2345 = vmatprep.subr.bf16.mxu0 0
        %2346 = vmatpush1.bf16.msra.mxu0 0
        %2347 = vmatprep.subr.bf16.mxu0 0
        %2348 = vmatpush1.bf16.msra.mxu0 0
        %2349 = vmatprep.subr.bf16.mxu0 0
        %2350 = vmatpush1.bf16.msra.mxu0 0
        %2351 = vmatprep.subr.bf16.mxu0 0
        %2352 = vmatpush1.bf16.msra.mxu0 0
        %2353 = vmatprep.mubr.bf16.mxu0 0
        %2354 = vmatmul.mubr.bf16.gmra.mrb[0].mxu0 %v2271
        %v2355 = vpop.f32.mrb[0].mxu0
        %v2356 = vadd.f32 %v2239, %v2355
        %v2357 = vpop.f32.mrb[0].mxu0
        %v2358 = vpop.f32.mrb[0].mxu0
        %v2359 = vpop.f32.mrb[0].mxu0
        %2360 = vdwg.mxu0
        %v2361 = vmax.f32 %v2356, 0.0
        %v2362 = vpack.c.bf16 %v2361, %v2361
        %v2363 = vld [vmem:[%s6] sm:$0xf]
        %v2364 = vld [vmem:[%s6 + $0x4] sm:$0xf]
        %v2365 = vld [vmem:[%s6 + $0x8] sm:$0xf]
        %v2366 = vld [vmem:[%s6 + $0xc] sm:$0xf]
        %v2367 = vld [vmem:[%s6 + $0x10] sm:$0xf]
        %v2368 = vld [vmem:[%s6 + $0x14] sm:$0xf]
        %v2369 = vld [vmem:[%s6 + $0x18] sm:$0xf]
        %v2370 = vld [vmem:[%s6 + $0x1c] sm:$0xf]
        %v2371 = vld [vmem:[%s6 + $0x20] sm:$0xf]
        %v2372 = vld [vmem:[%s6 + $0x24] sm:$0xf]
        %v2373 = vld [vmem:[%s6 + $0x28] sm:$0xf]
        %v2374 = vld [vmem:[%s6 + $0x2c] sm:$0xf]
        %v2375 = vld [vmem:[%s6 + $0x30] sm:$0xf]
        %v2376 = vld [vmem:[%s6 + $0x34] sm:$0xf]
        %v2377 = vld [vmem:[%s6 + $0x38] sm:$0xf]
        %v2378 = vld [vmem:[%s6 + $0x3c] sm:$0xf]
        %v2379 = vld [vmem:[%s7] sm:$0x1]
        %v2381 = vlaneseq
        %v2382 = vshrl.u32 %v2381, 7
        %v2383 = vsub.s32 0, %v2382
        %v2384 = vrot.slane %v2379, %v2383
        %v2402 = vunpack.c.l.b16 %v2363
        %v2403 = vunpack.c.l.b16 %v2364
        %v2404 = vunpack.c.l.b16 %v2365
        %v2405 = vunpack.c.l.b16 %v2366
        %v2406 = vunpack.c.l.b16 %v2367
        %v2407 = vunpack.c.l.b16 %v2368
        %v2408 = vunpack.c.l.b16 %v2369
        %v2409 = vunpack.c.l.b16 %v2370
        %v2410 = vunpack.c.l.b16 %v2371
        %v2411 = vunpack.c.l.b16 %v2372
        %v2412 = vunpack.c.l.b16 %v2373
        %v2413 = vunpack.c.l.b16 %v2374
        %v2414 = vunpack.c.l.b16 %v2375
        %v2415 = vunpack.c.l.b16 %v2376
        %v2416 = vunpack.c.l.b16 %v2377
        %v2417 = vunpack.c.l.b16 %v2378
        %v2418 = vpack.c.b16 %v2403, %v2402
        %v2419 = vpack.c.b16 %v2405, %v2404
        %v2420 = vpack.c.b16 %v2407, %v2406
        %v2421 = vpack.c.b16 %v2409, %v2408
        %v2422 = vpack.c.b16 %v2411, %v2410
        %v2423 = vpack.c.b16 %v2413, %v2412
        %v2424 = vpack.c.b16 %v2415, %v2414
        %v2425 = vpack.c.b16 %v2417, %v2416
        %2434 = vmatprep.subr.bf16.mxu0 0
        %2435 = vmatpush1.bf16.msra.mxu0 %v2418
        %2436 = vmatprep.subr.bf16.mxu0 0
        %2437 = vmatpush1.bf16.msra.mxu0 %v2419
        %2438 = vmatprep.subr.bf16.mxu0 0
        %2439 = vmatpush1.bf16.msra.mxu0 %v2420
        %2440 = vmatprep.subr.bf16.mxu0 0
        %2441 = vmatpush1.bf16.msra.mxu0 %v2421
        %2442 = vmatprep.subr.bf16.mxu0 0
        %2443 = vmatpush1.bf16.msra.mxu0 %v2422
        %2444 = vmatprep.subr.bf16.mxu0 0
        %2445 = vmatpush1.bf16.msra.mxu0 %v2423
        %2446 = vmatprep.subr.bf16.mxu0 0
        %2447 = vmatpush1.bf16.msra.mxu0 %v2424
        %2448 = vmatprep.subr.bf16.mxu0 0
        %2449 = vmatpush1.bf16.msra.mxu0 %v2425
        %2450 = vmatprep.subr.bf16.mxu0 0
        %2451 = vmatpush1.bf16.msra.mxu0 0
        %2452 = vmatprep.subr.bf16.mxu0 0
        %2453 = vmatpush1.bf16.msra.mxu0 0
        %2454 = vmatprep.subr.bf16.mxu0 0
        %2455 = vmatpush1.bf16.msra.mxu0 0
        %2456 = vmatprep.subr.bf16.mxu0 0
        %2457 = vmatpush1.bf16.msra.mxu0 0
        %2458 = vmatprep.subr.bf16.mxu0 0
        %2459 = vmatpush1.bf16.msra.mxu0 0
        %2460 = vmatprep.subr.bf16.mxu0 0
        %2461 = vmatpush1.bf16.msra.mxu0 0
        %2462 = vmatprep.subr.bf16.mxu0 0
        %2463 = vmatpush1.bf16.msra.mxu0 0
        %2464 = vmatprep.subr.bf16.mxu0 0
        %2465 = vmatpush1.bf16.msra.mxu0 0
        %2466 = vmatprep.mubr.bf16.mxu0 0
        %2467 = vmatmul.mubr.bf16.gmra.mrb[0].mxu0 %v2362
        %v2468 = vpop.f32.mrb[0].mxu0
        %v2469 = vadd.f32 %v2384, %v2468
        %v2470 = vpop.f32.mrb[0].mxu0
        %v2471 = vpop.f32.mrb[0].mxu0
        %v2472 = vpop.f32.mrb[0].mxu0
        %2473 = vdwg.mxu0
        %2474 = vst [vmem:[%s314] sm:$0xff] %v2469
        %s2475 = sand.u32 %s204, 1
        %s2476 = scalar_lea.sflag [#allocation4], %s2475
        %s2477 = sand.u32 %s204, 1
        %s2478 = smul.addr %s2477, 8
        %s2479 = scalar_lea.vmem [#allocation5], %s2478
        // Predicated region
        $region57: #{tpu_custom_call.1} parent=51 // pred_check
          %p2480 = pneg %p214
        $region58: #{tpu_custom_call.1} parent=51 // pred_check_branch
          %2482 = sbr.rel (%p2480) target = $region60
        $region59: #{tpu_custom_call.1} parent=51 // pred_region
          %s2484 = ssub.s32 128, 128
          %2485 = vsyncadd %s2476, %s2484
          %s2486 = smul.addr %s23, 128
          %s2487 = scalar_lea.hbm %s8, %s2486
          %s2489 = sshll.u32 %s2479, 4
          %s2490 = int_to_ptr.vmem [resolvable:$true] %s2489
          %2492 = dma.vmem_to_hbm [thread:$0]  %s2490, 128, %s2487, %s2476
        $region60: #{tpu_custom_call.1} parent=51 // pred_fallthru
          _
      $region52: #{tpu_custom_call.1} parent=5 // pred_fallthru
        _
      %p2493 = scmp.le.s32.totalorder 2, %s18
      // Predicated region
      $region61: #{tpu_custom_call.1} parent=5 // pred_check
        %p2494 = pneg %p2493
      $region62: #{tpu_custom_call.1} parent=5 // pred_check_branch
        %2496 = sbr.rel (%p2494) target = $region64
      $region63: #{tpu_custom_call.1} parent=5 // pred_region
        %s2497 = ssub.s32 %s18, 2
        // Predicated region
        $region65: #{tpu_custom_call.1} parent=63 // pred_check
          %p2498 = pneg %p220
        $region66: #{tpu_custom_call.1} parent=63 // pred_check_branch
          %2500 = sbr.rel (%p2498) target = $region68
        $region67: #{tpu_custom_call.1} parent=63 // pred_region
          %s2501 = sand.u32 %s205, 1
          %s2502 = scalar_lea.sflag [#allocation4], %s2501
          %s2503 = sand.u32 %s205, 1
          %s2504 = smul.addr %s2503, 8
          %s2505 = scalar_lea.vmem [#allocation5], %s2504
          %2506 = dma.done %s2502, 128
        $region68: #{tpu_custom_call.1} parent=63 // pred_fallthru
          _
      $region64: #{tpu_custom_call.1} parent=5 // pred_fallthru
        _
    $region6: #{tpu_custom_call.1} parent=1 // loop_footer
      %s22 = sadd.s32 1, %s18
    $region7: #{tpu_custom_call.1} parent=1 // loop_footer_branch
      %17 = sbr.rel target = $region3
    $region8: #{tpu_custom_call.1} parent=1 // loop_exit
      _
    %2507 = vsyncpa [#allocation3], 1
    %s2508 = scalar_lea.sflag [#allocation3], 1
    %2509 = vsyncpa %s2508, 1
    %2510 = vsyncpa [#allocation4], 1
    %s2511 = scalar_lea.sflag [#allocation4], 1
    %2512 = vsyncpa %s2511, 1

</llo_original>
